<compile_context>
chip_gen: v5e
topology: v5e:2x2
jax: 0.10.0
libtpu: 0.0.40
codegen_flags: <defaults>
</compile_context>

<pallas_src>
import jax
import jax.numpy as jnp
from jax.experimental import pallas as pl
from jax.experimental.pallas import tpu as pltpu


# ----------------------------------------------------------------------------
# Pallas kernel: 3x (Conv1d k=3 pad=1 -> BN(eval) -> LeakyReLU(0.1) -> Dropout
# (identity)) -> masked global average pool over true length -> Linear proj.
# Processes BLOCK_N segments per grid step, flattened to (BLOCK_N*L, C) rows.
# ----------------------------------------------------------------------------
def imu_encoder_kernel(mask_ref, x_ref,
                       w1_ref, s1_ref, t1_ref,
                       w2_ref, s2_ref, t2_ref,
                       w3_ref, s3_ref, t3_ref,
                       wp_ref, bp_ref,
                       out_ref):
    BN, L, cin = x_ref.shape
    M = BN * L

    # Per-row validity (1.0 inside each segment's true length) and true lengths.
    mask3 = mask_ref[...]                                   # (BN, L, 1) f32
    valid = mask3.reshape(M, 1)                             # (M, 1)
    count = jnp.sum(mask3, axis=1)                          # (BN, 1) segment lengths

    # Position-in-segment per flattened row (rows of one segment are contiguous).
    pos = jax.lax.broadcasted_iota(jnp.int32, (BN, L, 1), 1).reshape(M, 1)
    not_first = pos != 0
    not_last = pos != (L - 1)

    # bf16 in HBM -> f32 for all element-wise / shift work (v5e-safe).
    h = x_ref[...].astype(jnp.float32).reshape(M, cin)

    def conv_bn_lrelu(h, w_ref, s_ref, t_ref):
        # k=3, padding=1 conv as ONE matmul: [h[l-1] | h[l] | h[l+1]] @ (3*Cin, Cout).
        # Rolls go to the XLU; wrapped edge rows (segment boundaries / conv padding)
        # are zeroed with a VPU select -- no concatenate-with-zero-pad copies.
        prev = jnp.where(not_first, pltpu.roll(h, shift=1, axis=0), 0.0)
        nxt = jnp.where(not_last, pltpu.roll(h, shift=M - 1, axis=0), 0.0)
        taps = jnp.concatenate([prev, h, nxt], axis=-1)      # (M, 3*Cin)
        y = jnp.dot(taps.astype(w_ref.dtype), w_ref[...],
                    preferred_element_type=jnp.float32)      # bf16 MXU, f32 accum
        y = y * s_ref[...] + t_ref[...]                      # conv bias + BN (eval) folded
        y = jnp.where(y > 0, y, 0.1 * y)                     # LeakyReLU(0.1); Dropout = id (eval)
        return y * valid                                     # rows past segment end stay 0

    h = conv_bn_lrelu(h, w1_ref, s1_ref, t1_ref)
    h = conv_bn_lrelu(h, w2_ref, s2_ref, t2_ref)
    h = conv_bn_lrelu(h, w3_ref, s3_ref, t3_ref)             # (M, C3) f32

    # AdaptiveAvgPool1d(1): masked mean over each segment's true length.
    c3 = h.shape[-1]
    pooled = jnp.sum(h.reshape(BN, L, c3), axis=1)           # (BN, C3)
    pooled = pooled * (1.0 / jnp.maximum(count, 1.0))

    # Projection (lane-dense, padded to a multiple of 128 columns).
    out = jnp.dot(pooled, wp_ref[...], preferred_element_type=jnp.float32) + bp_ref[...]
    out_ref[...] = jnp.where(count > 0.5, out, 0.0)          # empty segment -> exact zeros


# ----------------------------------------------------------------------------
# Wrapper
# ----------------------------------------------------------------------------
def imu_cnn_encoder(x, valid_mask, params, *, output_dim, block_n=256):
    """x: (N, L, 6) bf16 zero-padded segments; valid_mask: (N, L, 1) f32.

    Returns (N, output_dim) float32.
    """
    N, L, cin = x.shape
    block_n = max(8, min(block_n, ((N + 7) // 8) * 8))
    assert block_n % 8 == 0
    G = pl.cdiv(N, block_n)
    n_pad = G * block_n
    if n_pad != N:
        x = jnp.pad(x, ((0, n_pad - N), (0, 0), (0, 0)))
        valid_mask = jnp.pad(valid_mask, ((0, n_pad - N), (0, 0), (0, 0)))
    d_pad = params["wp"].shape[1]

    names = ["w1", "s1", "t1", "w2", "s2", "t2", "w3", "s3", "t3", "wp", "bp"]
    weights = [params[n] for n in names]

    def const_spec(a):
        return pl.BlockSpec(a.shape, lambda g, _nd=a.ndim: (0,) * _nd)

    in_specs = [pl.BlockSpec((block_n, L, 1), lambda g: (g, 0, 0)),
                pl.BlockSpec((block_n, L, cin), lambda g: (g, 0, 0))]
    in_specs += [const_spec(a) for a in weights]

    out = pl.pallas_call(
        imu_encoder_kernel,
        out_shape=jax.ShapeDtypeStruct((n_pad, d_pad), jnp.float32),
        grid=(G,),
        in_specs=in_specs,
        out_specs=pl.BlockSpec((block_n, d_pad), lambda g: (g, 0)),
        compiler_params=pltpu.CompilerParams(dimension_semantics=("parallel",)),
    )(valid_mask, x, *weights)
    return out[:N, :output_dim]


# ----------------------------------------------------------------------------
# Deterministic "module" parameters + packing for the kernel
# ----------------------------------------------------------------------------
def init_params(key, input_channels=6, hidden_channels=(8, 16, 32), output_dim=32,
                eps=1e-5):
    raw = {"eps": eps}
    cin = input_channels
    for i, cout in enumerate(hidden_channels, start=1):
        key, k1, k2, k3, k4, k5, k6 = jax.random.split(key, 7)
        raw[f"w{i}"] = 0.1 * jax.random.normal(k1, (3, cin, cout), jnp.float32)   # (k, Cin, Cout)
        raw[f"b{i}"] = 0.1 * jax.random.normal(k2, (cout,), jnp.float32)          # conv bias
        raw[f"gamma{i}"] = 1.0 + 0.1 * jax.random.normal(k3, (cout,), jnp.float32)
        raw[f"beta{i}"] = 0.1 * jax.random.normal(k4, (cout,), jnp.float32)
        raw[f"mean{i}"] = 0.1 * jax.random.normal(k5, (cout,), jnp.float32)       # running_mean
        raw[f"var{i}"] = jnp.abs(jax.random.normal(k6, (cout,), jnp.float32)) + 0.5
        cin = cout
    key, kp, kb = jax.random.split(key, 3)
    raw["wp"] = 0.1 * jax.random.normal(kp, (cin, output_dim), jnp.float32)
    raw["bp"] = 0.1 * jax.random.normal(kb, (output_dim,), jnp.float32)
    return raw


def pack_params(raw, num_layers=3, lane=128):
    """Fold conv-bias + BN(eval) into scale/shift, fuse the 3 conv taps into one
    (3*Cin, Cout) bf16 matrix, and pad the projection to a lane-dense width.
    Also returns f32 reference params built from the SAME bf16-rounded weights."""
    kp, ref = {}, {}
    eps = raw["eps"]
    for i in range(1, num_layers + 1):
        w = raw[f"w{i}"]
        wb = w.astype(jnp.bfloat16)                       # what the MXU consumes
        s = raw[f"gamma{i}"] / jnp.sqrt(raw[f"var{i}"] + eps)
        t = raw[f"beta{i}"] + (raw[f"b{i}"] - raw[f"mean{i}"]) * s   # exact fold
        k3, cin, cout = w.shape
        kp[f"w{i}"] = wb.reshape(k3 * cin, cout)          # taps concatenated along K
        kp[f"s{i}"] = s.reshape(1, cout)
        kp[f"t{i}"] = t.reshape(1, cout)
        ref[f"w{i}"] = wb.astype(jnp.float32)             # bf16-rounded, f32 math in ref
        ref[f"s{i}"] = s.reshape(1, cout)
        ref[f"t{i}"] = t.reshape(1, cout)
    wp, bp = raw["wp"], raw["bp"]
    c3, d = wp.shape
    d_pad = ((d + lane - 1) // lane) * lane
    kp["wp"] = jnp.pad(wp, ((0, 0), (0, d_pad - d)))      # f32 projection, lane-dense
    kp["bp"] = jnp.pad(bp, ((0, d_pad - d),)).reshape(1, d_pad)
    ref["wp"] = wp
    ref["bp"] = bp.reshape(1, d)
    return kp, ref


# ----------------------------------------------------------------------------
# Pure-JAX reference: per-segment loop exactly like the PyTorch forward (eval)
# ----------------------------------------------------------------------------
def reference_forward_segment(seq, params, num_layers=3):
    """seq: (Li, 6), already bf16-rounded; weights are the same bf16-rounded values
    the kernel uses, so only accumulation order differs from the kernel."""
    h = seq[None]                                            # (1, Li, Cin)
    for i in range(1, num_layers + 1):
        h_in = h.astype(jnp.bfloat16).astype(jnp.float32)    # kernel feeds the MXU bf16
        y = jax.lax.conv_general_dilated(
            h_in, params[f"w{i}"], window_strides=(1,), padding=((1, 1),),
            dimension_numbers=("NWC", "WIO", "NWC"),
            precision=jax.lax.Precision.HIGHEST)
        y = y * params[f"s{i}"] + params[f"t{i}"]
        h = jnp.where(y > 0, y, 0.1 * y)                     # LeakyReLU(0.1)
    pooled = jnp.mean(h, axis=1)                             # AdaptiveAvgPool1d(1)
    out = jnp.dot(pooled, params["wp"],
                  precision=jax.lax.Precision.HIGHEST) + params["bp"]
    return out[0]


if __name__ == "__main__":
    key = jax.random.PRNGKey(0)

    # Small synthetic config (module defaults scaled down; input_channels=6 is IMU-fixed).
    batch_size, seq_len = 2, 8          # N = B*T = 16 segments -> 2 grid steps at block_n=8
    max_len = 16                        # fixed per-segment length budget for the kernel
    input_channels = 6
    hidden_channels = (8, 16, 32)
    output_dim = 32

    # Variable-length IMU segments imu_sequences[b][t] ~ (num_samples, 6), incl. an empty one.
    lengths_list = [[12, 16, 3, 0, 5, 16, 9, 7],
                    [16, 11, 1, 14, 8, 2, 13, 16]]
    seqs = []
    for b in range(batch_size):
        for t in range(seq_len):
            key, sub = jax.random.split(key)
            seqs.append(jax.random.normal(sub, (lengths_list[b][t], input_channels), jnp.float32))

    # Host-side glue (mirrors the PyTorch list-of-lists handling): zero-pad segments
    # to max_len, channel-last, plus a per-row validity mask.
    # TODO(synk): segments longer than max_len would be truncated by this fixed-length design.
    n_seg = len(seqs)
    x = jnp.zeros((n_seg, max_len, input_channels), jnp.float32)
    lengths = []
    for n, s in enumerate(seqs):
        li = min(s.shape[0], max_len)
        lengths.append(li)
        x = x.at[n, :li].set(s[:li])
    lengths = jnp.array(lengths, jnp.int32)
    valid_mask = (jnp.arange(max_len)[None, :] < lengths[:, None]).astype(jnp.float32)[..., None]
    x_bf16 = x.astype(jnp.bfloat16)     # kernel consumes bf16 activations (f32 accumulation)

    key, pkey = jax.random.split(key)
    raw = init_params(pkey, input_channels, hidden_channels, output_dim)
    kparams, refparams = pack_params(raw, num_layers=len(hidden_channels))

    feats = imu_cnn_encoder(x_bf16, valid_mask, kparams, output_dim=output_dim, block_n=8)
    feats = jax.block_until_ready(feats)
    assert feats.shape == (n_seg, output_dim)

    # Reference: per-segment loop exactly like the PyTorch module (eval mode).
    x_round = x_bf16.astype(jnp.float32)
    ref_rows = []
    for n in range(n_seg):
        li = int(lengths[n])
        if li == 0:
            ref_rows.append(jnp.zeros((output_dim,), jnp.float32))
        else:
            ref_rows.append(reference_forward_segment(
                x_round[n, :li], refparams, num_layers=len(hidden_channels)))
    ref = jnp.stack(ref_rows, axis=0)

    max_diff = float(jnp.max(jnp.abs(feats - ref)))
    assert jnp.allclose(feats, ref, rtol=2e-2, atol=2e-2), f"max abs diff {max_diff}"

    feats_bt = feats.reshape(batch_size, seq_len, output_dim)   # [B, T-1, output_dim]
    assert feats_bt.shape == (batch_size, seq_len, output_dim)

    print("KERNEL_OK")
</pallas_src>

<mosaic_0001>
module attributes {stable_mosaic.version = 11 : i64} {
  func.func @imu_encoder_kernel(%arg0: i32, %arg1: memref<8x16x1xf32, #tpu.memory_space<vmem>>, %arg2: memref<8x16x6xbf16, #tpu.memory_space<vmem>>, %arg3: memref<18x8xbf16, #tpu.memory_space<vmem>>, %arg4: memref<1x8xf32, #tpu.memory_space<vmem>>, %arg5: memref<1x8xf32, #tpu.memory_space<vmem>>, %arg6: memref<24x16xbf16, #tpu.memory_space<vmem>>, %arg7: memref<1x16xf32, #tpu.memory_space<vmem>>, %arg8: memref<1x16xf32, #tpu.memory_space<vmem>>, %arg9: memref<48x32xbf16, #tpu.memory_space<vmem>>, %arg10: memref<1x32xf32, #tpu.memory_space<vmem>>, %arg11: memref<1x32xf32, #tpu.memory_space<vmem>>, %arg12: memref<32x128xf32, #tpu.memory_space<vmem>>, %arg13: memref<1x128xf32, #tpu.memory_space<vmem>>, %arg14: memref<8x128xf32, #tpu.memory_space<vmem>>) attributes {dimension_semantics = [#tpu.dimension_semantics<parallel>], iteration_bounds = array<i64: 2>, scalar_prefetch = 0 : i64, scratch_operands = 0 : i64, tpu.core_type = #tpu.core_type<tc>, window_params = [{transform_indices = @transform_0, window_bounds = array<i64: 8, 16, 1>}, {transform_indices = @transform_1, window_bounds = array<i64: 8, 16, 6>}, {pipeline_mode = #tpu.pipeline_mode<synchronous>, transform_indices = @transform_2, window_bounds = array<i64: 18, 8>}, {pipeline_mode = #tpu.pipeline_mode<synchronous>, transform_indices = @transform_3, window_bounds = array<i64: 1, 8>}, {pipeline_mode = #tpu.pipeline_mode<synchronous>, transform_indices = @transform_4, window_bounds = array<i64: 1, 8>}, {pipeline_mode = #tpu.pipeline_mode<synchronous>, transform_indices = @transform_5, window_bounds = array<i64: 24, 16>}, {pipeline_mode = #tpu.pipeline_mode<synchronous>, transform_indices = @transform_6, window_bounds = array<i64: 1, 16>}, {pipeline_mode = #tpu.pipeline_mode<synchronous>, transform_indices = @transform_7, window_bounds = array<i64: 1, 16>}, {pipeline_mode = #tpu.pipeline_mode<synchronous>, transform_indices = @transform_8, window_bounds = array<i64: 48, 32>}, {pipeline_mode = #tpu.pipeline_mode<synchronous>, transform_indices = @transform_9, window_bounds = array<i64: 1, 32>}, {pipeline_mode = #tpu.pipeline_mode<synchronous>, transform_indices = @transform_10, window_bounds = array<i64: 1, 32>}, {pipeline_mode = #tpu.pipeline_mode<synchronous>, transform_indices = @transform_11, window_bounds = array<i64: 32, 128>}, {pipeline_mode = #tpu.pipeline_mode<synchronous>, transform_indices = @transform_12, window_bounds = array<i64: 1, 128>}, {transform_indices = @transform_13, window_bounds = array<i64: 8, 128>}]} {
    %c0 = arith.constant 0 : index
    %c0_0 = arith.constant 0 : index
    %c0_1 = arith.constant 0 : index
    %0 = vector.load %arg1[%c0, %c0_0, %c0_1] : memref<8x16x1xf32, #tpu.memory_space<vmem>>, vector<8x16x1xf32>
    %1 = vector.shape_cast %0 : vector<8x16x1xf32> to vector<128x1xf32>
    %cst = arith.constant dense<0.000000e+00> : vector<8x1xf32>
    %2 = vector.multi_reduction <add>, %0, %cst [1] : vector<8x16x1xf32> to vector<8x1xf32>
    %3 = tpu.iota {dimensions = array<i32: 1>} : vector<8x16x1xi32>
    %4 = vector.shape_cast %3 : vector<8x16x1xi32> to vector<128x1xi32>
    %c0_i32 = arith.constant 0 : i32
    %5 = vector.broadcast %c0_i32 : i32 to vector<128x1xi32>
    %6 = arith.cmpi ne, %4, %5 : vector<128x1xi32>
    %c15_i32 = arith.constant 15 : i32
    %7 = vector.broadcast %c15_i32 : i32 to vector<128x1xi32>
    %8 = arith.cmpi ne, %4, %7 : vector<128x1xi32>
    %c0_2 = arith.constant 0 : index
    %c0_3 = arith.constant 0 : index
    %c0_4 = arith.constant 0 : index
    %9 = vector.load %arg2[%c0_2, %c0_3, %c0_4] : memref<8x16x6xbf16, #tpu.memory_space<vmem>>, vector<8x16x6xbf16>
    %10 = arith.extf %9 : vector<8x16x6xbf16> to vector<8x16x6xf32>
    %11 = vector.shape_cast %10 : vector<8x16x6xf32> to vector<128x6xf32>
    %c1_i32 = arith.constant 1 : i32
    %12 = tpu.dynamic_rotate %11 by %c1_i32 dim 0 : vector<128x6xf32>, i32 -> vector<128x6xf32>
    %cst_5 = arith.constant 0.000000e+00 : f32
    %13 = vector.shape_cast %6 : vector<128x1xi1> to vector<128x1xi1>
    %14 = vector.broadcast %13 : vector<128x1xi1> to vector<128x6xi1>
    %15 = vector.broadcast %cst_5 : f32 to vector<128x6xf32>
    %16 = arith.select %14, %12, %15 : vector<128x6xi1>, vector<128x6xf32>
    %c127_i32 = arith.constant 127 : i32
    %17 = tpu.dynamic_rotate %11 by %c127_i32 dim 0 : vector<128x6xf32>, i32 -> vector<128x6xf32>
    %cst_6 = arith.constant 0.000000e+00 : f32
    %18 = vector.shape_cast %8 : vector<128x1xi1> to vector<128x1xi1>
    %19 = vector.broadcast %18 : vector<128x1xi1> to vector<128x6xi1>
    %20 = vector.broadcast %cst_6 : f32 to vector<128x6xf32>
    %21 = arith.select %19, %17, %20 : vector<128x6xi1>, vector<128x6xf32>
    %22 = tpu.concatenate %16, %11, %21 in 1 : vector<128x6xf32>, vector<128x6xf32>, vector<128x6xf32> -> vector<128x18xf32>
    %23 = arith.truncf %22 : vector<128x18xf32> to vector<128x18xbf16>
    %c0_7 = arith.constant 0 : index
    %c0_8 = arith.constant 0 : index
    %24 = vector.load %arg3[%c0_7, %c0_8] : memref<18x8xbf16, #tpu.memory_space<vmem>>, vector<18x8xbf16>
    %cst_9 = arith.constant dense<0.000000e+00> : vector<128x8xf32>
    %25 = tpu.matmul %23, %24, %cst_9 {dimension_numbers = #tpu.dot_dimension_numbers<[1], [0], [0], [1], [0, 0, 1, 1], [], []>} : vector<128x18xbf16>, vector<18x8xbf16>, vector<128x8xf32> -> vector<128x8xf32>
    %c0_10 = arith.constant 0 : index
    %c0_11 = arith.constant 0 : index
    %26 = vector.load %arg4[%c0_10, %c0_11] : memref<1x8xf32, #tpu.memory_space<vmem>>, vector<1x8xf32>
    %27 = vector.broadcast %26 : vector<1x8xf32> to vector<128x8xf32>
    %28 = arith.mulf %25, %27 : vector<128x8xf32>
    %c0_12 = arith.constant 0 : index
    %c0_13 = arith.constant 0 : index
    %29 = vector.load %arg5[%c0_12, %c0_13] : memref<1x8xf32, #tpu.memory_space<vmem>>, vector<1x8xf32>
    %30 = vector.broadcast %29 : vector<1x8xf32> to vector<128x8xf32>
    %31 = arith.addf %28, %30 : vector<128x8xf32>
    %cst_14 = arith.constant 0.000000e+00 : f32
    %32 = vector.broadcast %cst_14 : f32 to vector<128x8xf32>
    %33 = arith.cmpf ogt, %31, %32 : vector<128x8xf32>
    %cst_15 = arith.constant 1.000000e-01 : f32
    %34 = vector.broadcast %cst_15 : f32 to vector<128x8xf32>
    %35 = arith.mulf %34, %31 : vector<128x8xf32>
    %36 = arith.select %33, %31, %35 : vector<128x8xi1>, vector<128x8xf32>
    %37 = vector.broadcast %1 : vector<128x1xf32> to vector<128x8xf32>
    %38 = arith.mulf %36, %37 : vector<128x8xf32>
    %c1_i32_16 = arith.constant 1 : i32
    %39 = tpu.dynamic_rotate %38 by %c1_i32_16 dim 0 : vector<128x8xf32>, i32 -> vector<128x8xf32>
    %cst_17 = arith.constant 0.000000e+00 : f32
    %40 = vector.shape_cast %6 : vector<128x1xi1> to vector<128x1xi1>
    %41 = vector.broadcast %40 : vector<128x1xi1> to vector<128x8xi1>
    %42 = vector.broadcast %cst_17 : f32 to vector<128x8xf32>
    %43 = arith.select %41, %39, %42 : vector<128x8xi1>, vector<128x8xf32>
    %c127_i32_18 = arith.constant 127 : i32
    %44 = tpu.dynamic_rotate %38 by %c127_i32_18 dim 0 : vector<128x8xf32>, i32 -> vector<128x8xf32>
    %cst_19 = arith.constant 0.000000e+00 : f32
    %45 = vector.shape_cast %8 : vector<128x1xi1> to vector<128x1xi1>
    %46 = vector.broadcast %45 : vector<128x1xi1> to vector<128x8xi1>
    %47 = vector.broadcast %cst_19 : f32 to vector<128x8xf32>
    %48 = arith.select %46, %44, %47 : vector<128x8xi1>, vector<128x8xf32>
    %49 = tpu.concatenate %43, %38, %48 in 1 : vector<128x8xf32>, vector<128x8xf32>, vector<128x8xf32> -> vector<128x24xf32>
    %50 = arith.truncf %49 : vector<128x24xf32> to vector<128x24xbf16>
    %c0_20 = arith.constant 0 : index
    %c0_21 = arith.constant 0 : index
    %51 = vector.load %arg6[%c0_20, %c0_21] : memref<24x16xbf16, #tpu.memory_space<vmem>>, vector<24x16xbf16>
    %cst_22 = arith.constant dense<0.000000e+00> : vector<128x16xf32>
    %52 = tpu.matmul %50, %51, %cst_22 {dimension_numbers = #tpu.dot_dimension_numbers<[1], [0], [0], [1], [0, 0, 1, 1], [], []>} : vector<128x24xbf16>, vector<24x16xbf16>, vector<128x16xf32> -> vector<128x16xf32>
    %c0_23 = arith.constant 0 : index
    %c0_24 = arith.constant 0 : index
    %53 = vector.load %arg7[%c0_23, %c0_24] : memref<1x16xf32, #tpu.memory_space<vmem>>, vector<1x16xf32>
    %54 = vector.broadcast %53 : vector<1x16xf32> to vector<128x16xf32>
    %55 = arith.mulf %52, %54 : vector<128x16xf32>
    %c0_25 = arith.constant 0 : index
    %c0_26 = arith.constant 0 : index
    %56 = vector.load %arg8[%c0_25, %c0_26] : memref<1x16xf32, #tpu.memory_space<vmem>>, vector<1x16xf32>
    %57 = vector.broadcast %56 : vector<1x16xf32> to vector<128x16xf32>
    %58 = arith.addf %55, %57 : vector<128x16xf32>
    %cst_27 = arith.constant 0.000000e+00 : f32
    %59 = vector.broadcast %cst_27 : f32 to vector<128x16xf32>
    %60 = arith.cmpf ogt, %58, %59 : vector<128x16xf32>
    %cst_28 = arith.constant 1.000000e-01 : f32
    %61 = vector.broadcast %cst_28 : f32 to vector<128x16xf32>
    %62 = arith.mulf %61, %58 : vector<128x16xf32>
    %63 = arith.select %60, %58, %62 : vector<128x16xi1>, vector<128x16xf32>
    %64 = vector.broadcast %1 : vector<128x1xf32> to vector<128x16xf32>
    %65 = arith.mulf %63, %64 : vector<128x16xf32>
    %c1_i32_29 = arith.constant 1 : i32
    %66 = tpu.dynamic_rotate %65 by %c1_i32_29 dim 0 : vector<128x16xf32>, i32 -> vector<128x16xf32>
    %cst_30 = arith.constant 0.000000e+00 : f32
    %67 = vector.shape_cast %6 : vector<128x1xi1> to vector<128x1xi1>
    %68 = vector.broadcast %67 : vector<128x1xi1> to vector<128x16xi1>
    %69 = vector.broadcast %cst_30 : f32 to vector<128x16xf32>
    %70 = arith.select %68, %66, %69 : vector<128x16xi1>, vector<128x16xf32>
    %c127_i32_31 = arith.constant 127 : i32
    %71 = tpu.dynamic_rotate %65 by %c127_i32_31 dim 0 : vector<128x16xf32>, i32 -> vector<128x16xf32>
    %cst_32 = arith.constant 0.000000e+00 : f32
    %72 = vector.shape_cast %8 : vector<128x1xi1> to vector<128x1xi1>
    %73 = vector.broadcast %72 : vector<128x1xi1> to vector<128x16xi1>
    %74 = vector.broadcast %cst_32 : f32 to vector<128x16xf32>
    %75 = arith.select %73, %71, %74 : vector<128x16xi1>, vector<128x16xf32>
    %76 = tpu.concatenate %70, %65, %75 in 1 : vector<128x16xf32>, vector<128x16xf32>, vector<128x16xf32> -> vector<128x48xf32>
    %77 = arith.truncf %76 : vector<128x48xf32> to vector<128x48xbf16>
    %c0_33 = arith.constant 0 : index
    %c0_34 = arith.constant 0 : index
    %78 = vector.load %arg9[%c0_33, %c0_34] : memref<48x32xbf16, #tpu.memory_space<vmem>>, vector<48x32xbf16>
    %cst_35 = arith.constant dense<0.000000e+00> : vector<128x32xf32>
    %79 = tpu.matmul %77, %78, %cst_35 {dimension_numbers = #tpu.dot_dimension_numbers<[1], [0], [0], [1], [0, 0, 1, 1], [], []>} : vector<128x48xbf16>, vector<48x32xbf16>, vector<128x32xf32> -> vector<128x32xf32>
    %c0_36 = arith.constant 0 : index
    %c0_37 = arith.constant 0 : index
    %80 = vector.load %arg10[%c0_36, %c0_37] : memref<1x32xf32, #tpu.memory_space<vmem>>, vector<1x32xf32>
    %81 = vector.broadcast %80 : vector<1x32xf32> to vector<128x32xf32>
    %82 = arith.mulf %79, %81 : vector<128x32xf32>
    %c0_38 = arith.constant 0 : index
    %c0_39 = arith.constant 0 : index
    %83 = vector.load %arg11[%c0_38, %c0_39] : memref<1x32xf32, #tpu.memory_space<vmem>>, vector<1x32xf32>
    %84 = vector.broadcast %83 : vector<1x32xf32> to vector<128x32xf32>
    %85 = arith.addf %82, %84 : vector<128x32xf32>
    %cst_40 = arith.constant 0.000000e+00 : f32
    %86 = vector.broadcast %cst_40 : f32 to vector<128x32xf32>
    %87 = arith.cmpf ogt, %85, %86 : vector<128x32xf32>
    %cst_41 = arith.constant 1.000000e-01 : f32
    %88 = vector.broadcast %cst_41 : f32 to vector<128x32xf32>
    %89 = arith.mulf %88, %85 : vector<128x32xf32>
    %90 = arith.select %87, %85, %89 : vector<128x32xi1>, vector<128x32xf32>
    %91 = vector.broadcast %1 : vector<128x1xf32> to vector<128x32xf32>
    %92 = arith.mulf %90, %91 : vector<128x32xf32>
    %93 = vector.shape_cast %92 : vector<128x32xf32> to vector<8x16x32xf32>
    %cst_42 = arith.constant dense<0.000000e+00> : vector<8x32xf32>
    %94 = vector.multi_reduction <add>, %93, %cst_42 [1] : vector<8x16x32xf32> to vector<8x32xf32>
    %cst_43 = arith.constant 1.000000e+00 : f32
    %95 = vector.broadcast %cst_43 : f32 to vector<8x1xf32>
    %96 = arith.maximumf %2, %95 : vector<8x1xf32>
    %cst_44 = arith.constant 1.000000e+00 : f32
    %97 = vector.broadcast %cst_44 : f32 to vector<8x1xf32>
    %98 = arith.divf %97, %96 : vector<8x1xf32>
    %99 = vector.broadcast %98 : vector<8x1xf32> to vector<8x32xf32>
    %100 = arith.mulf %94, %99 : vector<8x32xf32>
    %c0_45 = arith.constant 0 : index
    %c0_46 = arith.constant 0 : index
    %101 = vector.load %arg12[%c0_45, %c0_46] : memref<32x128xf32, #tpu.memory_space<vmem>>, vector<32x128xf32>
    %cst_47 = arith.constant dense<0.000000e+00> : vector<8x128xf32>
    %102 = tpu.matmul %100, %101, %cst_47 {dimension_numbers = #tpu.dot_dimension_numbers<[1], [0], [0], [1], [0, 0, 1, 1], [], []>} : vector<8x32xf32>, vector<32x128xf32>, vector<8x128xf32> -> vector<8x128xf32>
    %c0_48 = arith.constant 0 : index
    %c0_49 = arith.constant 0 : index
    %103 = vector.load %arg13[%c0_48, %c0_49] : memref<1x128xf32, #tpu.memory_space<vmem>>, vector<1x128xf32>
    %104 = vector.broadcast %103 : vector<1x128xf32> to vector<8x128xf32>
    %105 = arith.addf %102, %104 : vector<8x128xf32>
    %cst_50 = arith.constant 5.000000e-01 : f32
    %106 = vector.broadcast %cst_50 : f32 to vector<8x1xf32>
    %107 = arith.cmpf ogt, %2, %106 : vector<8x1xf32>
    %cst_51 = arith.constant 0.000000e+00 : f32
    %108 = vector.shape_cast %107 : vector<8x1xi1> to vector<8x1xi1>
    %109 = vector.broadcast %108 : vector<8x1xi1> to vector<8x128xi1>
    %110 = vector.broadcast %cst_51 : f32 to vector<8x128xf32>
    %111 = arith.select %109, %105, %110 : vector<8x128xi1>, vector<8x128xf32>
    %c0_52 = arith.constant 0 : index
    %c0_53 = arith.constant 0 : index
    %112 = vector.load %arg14[%c0_52, %c0_53] : memref<8x128xf32, #tpu.memory_space<vmem>>, vector<8x128xf32>
    tpu.vector_store %arg14[%c0_52, %c0_53], %111 {strides = array<i32>} : memref<8x128xf32, #tpu.memory_space<vmem>>, vector<8x128xf32>,
    return
  }
  func.func @transform_0(%arg0: i32) -> (i32, i32, i32) {
    %c0_i32 = arith.constant 0 : i32
    %c0_i32_0 = arith.constant 0 : i32
    %c0_i32_1 = arith.constant 0 : i32
    return %arg0, %c0_i32, %c0_i32_0 : i32, i32, i32
  }
  func.func @transform_1(%arg0: i32) -> (i32, i32, i32) {
    %c0_i32 = arith.constant 0 : i32
    %c0_i32_0 = arith.constant 0 : i32
    %c0_i32_1 = arith.constant 0 : i32
    return %arg0, %c0_i32, %c0_i32_0 : i32, i32, i32
  }
  func.func @transform_2(%arg0: i32) -> (i32, i32) {
    %c0_i32 = arith.constant 0 : i32
    %c0_i32_0 = arith.constant 0 : i32
    %c0_i32_1 = arith.constant 0 : i32
    return %c0_i32, %c0_i32_0 : i32, i32
  }
  func.func @transform_3(%arg0: i32) -> (i32, i32) {
    %c0_i32 = arith.constant 0 : i32
    %c0_i32_0 = arith.constant 0 : i32
    %c0_i32_1 = arith.constant 0 : i32
    return %c0_i32, %c0_i32_0 : i32, i32
  }
  func.func @transform_4(%arg0: i32) -> (i32, i32) {
    %c0_i32 = arith.constant 0 : i32
    %c0_i32_0 = arith.constant 0 : i32
    %c0_i32_1 = arith.constant 0 : i32
    return %c0_i32, %c0_i32_0 : i32, i32
  }
  func.func @transform_5(%arg0: i32) -> (i32, i32) {
    %c0_i32 = arith.constant 0 : i32
    %c0_i32_0 = arith.constant 0 : i32
    %c0_i32_1 = arith.constant 0 : i32
    return %c0_i32, %c0_i32_0 : i32, i32
  }
  func.func @transform_6(%arg0: i32) -> (i32, i32) {
    %c0_i32 = arith.constant 0 : i32
    %c0_i32_0 = arith.constant 0 : i32
    %c0_i32_1 = arith.constant 0 : i32
    return %c0_i32, %c0_i32_0 : i32, i32
  }
  func.func @transform_7(%arg0: i32) -> (i32, i32) {
    %c0_i32 = arith.constant 0 : i32
    %c0_i32_0 = arith.constant 0 : i32
    %c0_i32_1 = arith.constant 0 : i32
    return %c0_i32, %c0_i32_0 : i32, i32
  }
  func.func @transform_8(%arg0: i32) -> (i32, i32) {
    %c0_i32 = arith.constant 0 : i32
    %c0_i32_0 = arith.constant 0 : i32
    %c0_i32_1 = arith.constant 0 : i32
    return %c0_i32, %c0_i32_0 : i32, i32
  }
  func.func @transform_9(%arg0: i32) -> (i32, i32) {
    %c0_i32 = arith.constant 0 : i32
    %c0_i32_0 = arith.constant 0 : i32
    %c0_i32_1 = arith.constant 0 : i32
    return %c0_i32, %c0_i32_0 : i32, i32
  }
  func.func @transform_10(%arg0: i32) -> (i32, i32) {
    %c0_i32 = arith.constant 0 : i32
    %c0_i32_0 = arith.constant 0 : i32
    %c0_i32_1 = arith.constant 0 : i32
    return %c0_i32, %c0_i32_0 : i32, i32
  }
  func.func @transform_11(%arg0: i32) -> (i32, i32) {
    %c0_i32 = arith.constant 0 : i32
    %c0_i32_0 = arith.constant 0 : i32
    %c0_i32_1 = arith.constant 0 : i32
    return %c0_i32, %c0_i32_0 : i32, i32
  }
  func.func @transform_12(%arg0: i32) -> (i32, i32) {
    %c0_i32 = arith.constant 0 : i32
    %c0_i32_0 = arith.constant 0 : i32
    %c0_i32_1 = arith.constant 0 : i32
    return %c0_i32, %c0_i32_0 : i32, i32
  }
  func.func @transform_13(%arg0: i32) -> (i32, i32) {
    %c0_i32 = arith.constant 0 : i32
    %c0_i32_0 = arith.constant 0 : i32
    return %arg0, %c0_i32 : i32, i32
  }
}

</mosaic_0001>

<llo_original>
// kernel: tpu_custom_call.1
$region0: #{tpu_custom_call.1}
  #allocation0 [shape = 'u32[]', space=smem, size = 0x4, offset = 0x4, fixed_abs, tag = 'smem constant byte address 0x4 - core index']
  #allocation1 [shape = 'u32[72,128]{1,0:T(1,128)}', space=vmem, size = 0x9000, scoped, tag = 'internal scratch']
  %s0 = inlined_call_operand.vmem [shape: f32[16,16,1], index: 0, kind: input, shape index: {}]
  %s1 = inlined_call_operand.vmem [shape: bf16[16,16,6], index: 1, kind: input, shape index: {}]
  %s2 = inlined_call_operand.vmem [shape: bf16[18,8], index: 2, kind: input, shape index: {}]
  %s3 = inlined_call_operand.vmem [shape: f32[1,8], index: 3, kind: input, shape index: {}]
  %s4 = inlined_call_operand.vmem [shape: f32[1,8], index: 4, kind: input, shape index: {}]
  %s5 = inlined_call_operand.vmem [shape: bf16[24,16], index: 5, kind: input, shape index: {}]
  %s6 = inlined_call_operand.vmem [shape: f32[1,16], index: 6, kind: input, shape index: {}]
  %s7 = inlined_call_operand.vmem [shape: f32[1,16], index: 7, kind: input, shape index: {}]
  %s8 = inlined_call_operand.vmem [shape: bf16[48,32], index: 8, kind: input, shape index: {}]
  %s9 = inlined_call_operand.vmem [shape: f32[1,32], index: 9, kind: input, shape index: {}]
  %s10 = inlined_call_operand.vmem [shape: f32[1,32], index: 10, kind: input, shape index: {}]
  %s11 = inlined_call_operand.vmem [shape: f32[32,128], index: 11, kind: input, shape index: {}]
  %s12 = inlined_call_operand.vmem [shape: f32[1,128], index: 12, kind: input, shape index: {}]
  %s13 = inlined_call_operand.hbm [shape: f32[16,128], index: 13, kind: output, shape index: {}]
  %s14 = sld [smem:[#allocation0]]
  $region85: #{tpu_custom_call.1} parent=0
    _
  %s16 = ssub.s32 1, %s14
  %s17 = scalar_select 0, %s16, %s14
  $region1: #{tpu_custom_call.1} parent=0
    #allocation2 [shape = 'u8[8192]{0}', space=vmem, size = 0x2000, scoped, tag = 'output window, operand 0']
    #allocation3 [shape = 's32[2]{0}', space=sflag, size = 0x8, scoped, tag = 'scoped memory for tpu_custom_call.1']
    %18 = vsyncpa [#allocation3], 0
    %s19 = scalar_lea.sflag [#allocation3], 1
    %20 = vsyncpa %s19, 0
    loop: start=0, step=1, limit=4
    $region2: #{tpu_custom_call.1} parent=1 // loop_pre_header
      _
    $region3: #{tpu_custom_call.1} parent=1 // loop_header
      %s22 = sphi 0, %s26
      %p23 = scmp.ge.s32.totalorder %s22, 4
      %s32 = sphi 0, %s34
      %s35 = sphi 0, %s32
      %s36 = sphi 0, %s35
      %s52 = sphi 0, %s36
      %s58 = sphi 0, %s60
      %s61 = sphi 0, %s58
      %s62 = sphi 0, %s61
      %s78 = sphi 0, %s62
      %s82 = sphi 0, %s82
      %s84 = sphi 0, %s82
      %s85 = sphi 0, %s84
      %s99 = sphi 0, %s85
      %s103 = sphi 0, %s103
      %s105 = sphi 0, %s103
      %s106 = sphi 0, %s105
      %s120 = sphi 0, %s106
      %s124 = sphi 0, %s124
      %s126 = sphi 0, %s124
      %s127 = sphi 0, %s126
      %s141 = sphi 0, %s127
      %s145 = sphi 0, %s145
      %s147 = sphi 0, %s145
      %s148 = sphi 0, %s147
      %s162 = sphi 0, %s148
      %s166 = sphi 0, %s166
      %s168 = sphi 0, %s166
      %s169 = sphi 0, %s168
      %s183 = sphi 0, %s169
      %s187 = sphi 0, %s187
      %s189 = sphi 0, %s187
      %s190 = sphi 0, %s189
      %s204 = sphi 0, %s190
      %s208 = sphi 0, %s208
      %s210 = sphi 0, %s208
      %s211 = sphi 0, %s210
      %s225 = sphi 0, %s211
      %s229 = sphi 0, %s229
      %s231 = sphi 0, %s229
      %s232 = sphi 0, %s231
      %s246 = sphi 0, %s232
      %s250 = sphi 0, %s250
      %s252 = sphi 0, %s250
      %s253 = sphi 0, %s252
      %s267 = sphi 0, %s253
      %s271 = sphi 0, %s271
      %s273 = sphi 0, %s271
      %s274 = sphi 0, %s273
      %s288 = sphi 0, %s274
      %s292 = sphi 0, %s292
      %s294 = sphi 0, %s292
      %s295 = sphi 0, %s294
      %s309 = sphi 0, %s295
      %s315 = sphi 0, %s317
      %s318 = sphi 0, %s315
      %s319 = sphi 0, %s318
      %s335 = sphi 0, %s319
    $region4: #{tpu_custom_call.1} parent=1 // loop_header_branch
      %25 = sbr.rel (%p23) target = $region8
    $region5: #{tpu_custom_call.1} parent=1 // loop_body
      %s27 = ssub.s32 %s22, 1
      %s28 = ssub.s32 %s22, 2
      %s29 = sadd.s32 %s22, 1
      %s30 = ssub.s32 %s22, %s29
      %p31 = scmp.eq.s32.totalorder %s30, 0
      %s33 = sadd.s32 %s32, 1
      %s34 = scalar_select %p31, %s32, %s33
      %p37 = pneg %p31
      %p38 = scmp.eq.s32.totalorder %s22, 1
      %p39 = por %p37, %p38
      %p40 = scmp.ne.s32.totalorder %s32, %s35
      %p41 = scmp.eq.s32.totalorder %s22, 0
      %p42 = por %p40, %p41
      %p43 = scmp.ne.s32.totalorder %s32, %s35
      %p44 = scmp.eq.s32.totalorder %s27, 1
      %p45 = por %p43, %p44
      %p46 = scmp.ne.s32.totalorder %s35, %s36
      %p47 = scmp.eq.s32.totalorder %s27, 0
      %p48 = por %p46, %p47
      %p49 = scmp.ne.s32.totalorder %s35, %s36
      %p50 = scmp.eq.s32.totalorder %s28, 1
      %p51 = por %p49, %p50
      %p53 = scmp.ne.s32.totalorder %s36, %s52
      %p54 = scmp.eq.s32.totalorder %s28, 0
      %p55 = por %p53, %p54
      %s56 = ssub.s32 %s22, %s29
      %p57 = scmp.eq.s32.totalorder %s56, 0
      %s59 = sadd.s32 %s58, 1
      %s60 = scalar_select %p57, %s58, %s59
      %p63 = pneg %p57
      %p64 = scmp.eq.s32.totalorder %s22, 1
      %p65 = por %p63, %p64
      %p66 = scmp.ne.s32.totalorder %s58, %s61
      %p67 = scmp.eq.s32.totalorder %s22, 0
      %p68 = por %p66, %p67
      %p69 = scmp.ne.s32.totalorder %s58, %s61
      %p70 = scmp.eq.s32.totalorder %s27, 1
      %p71 = por %p69, %p70
      %p72 = scmp.ne.s32.totalorder %s61, %s62
      %p73 = scmp.eq.s32.totalorder %s27, 0
      %p74 = por %p72, %p73
      %p75 = scmp.ne.s32.totalorder %s61, %s62
      %p76 = scmp.eq.s32.totalorder %s28, 1
      %p77 = por %p75, %p76
      %p79 = scmp.ne.s32.totalorder %s62, %s78
      %p80 = scmp.eq.s32.totalorder %s28, 0
      %p81 = por %p79, %p80
      %s83 = sadd.s32 %s82, 1
      %p86 = scmp.eq.s32.totalorder %s22, 1
      %p87 = scmp.ne.s32.totalorder %s82, %s84
      %p88 = scmp.eq.s32.totalorder %s22, 0
      %p89 = por %p87, %p88
      %p90 = scmp.ne.s32.totalorder %s82, %s84
      %p91 = scmp.eq.s32.totalorder %s27, 1
      %p92 = por %p90, %p91
      %p93 = scmp.ne.s32.totalorder %s84, %s85
      %p94 = scmp.eq.s32.totalorder %s27, 0
      %p95 = por %p93, %p94
      %p96 = scmp.ne.s32.totalorder %s84, %s85
      %p97 = scmp.eq.s32.totalorder %s28, 1
      %p98 = por %p96, %p97
      %p100 = scmp.ne.s32.totalorder %s85, %s99
      %p101 = scmp.eq.s32.totalorder %s28, 0
      %p102 = por %p100, %p101
      %s104 = sadd.s32 %s103, 1
      %p107 = scmp.eq.s32.totalorder %s22, 1
      %p108 = scmp.ne.s32.totalorder %s103, %s105
      %p109 = scmp.eq.s32.totalorder %s22, 0
      %p110 = por %p108, %p109
      %p111 = scmp.ne.s32.totalorder %s103, %s105
      %p112 = scmp.eq.s32.totalorder %s27, 1
      %p113 = por %p111, %p112
      %p114 = scmp.ne.s32.totalorder %s105, %s106
      %p115 = scmp.eq.s32.totalorder %s27, 0
      %p116 = por %p114, %p115
      %p117 = scmp.ne.s32.totalorder %s105, %s106
      %p118 = scmp.eq.s32.totalorder %s28, 1
      %p119 = por %p117, %p118
      %p121 = scmp.ne.s32.totalorder %s106, %s120
      %p122 = scmp.eq.s32.totalorder %s28, 0
      %p123 = por %p121, %p122
      %s125 = sadd.s32 %s124, 1
      %p128 = scmp.eq.s32.totalorder %s22, 1
      %p129 = scmp.ne.s32.totalorder %s124, %s126
      %p130 = scmp.eq.s32.totalorder %s22, 0
      %p131 = por %p129, %p130
      %p132 = scmp.ne.s32.totalorder %s124, %s126
      %p133 = scmp.eq.s32.totalorder %s27, 1
      %p134 = por %p132, %p133
      %p135 = scmp.ne.s32.totalorder %s126, %s127
      %p136 = scmp.eq.s32.totalorder %s27, 0
      %p137 = por %p135, %p136
      %p138 = scmp.ne.s32.totalorder %s126, %s127
      %p139 = scmp.eq.s32.totalorder %s28, 1
      %p140 = por %p138, %p139
      %p142 = scmp.ne.s32.totalorder %s127, %s141
      %p143 = scmp.eq.s32.totalorder %s28, 0
      %p144 = por %p142, %p143
      %s146 = sadd.s32 %s145, 1
      %p149 = scmp.eq.s32.totalorder %s22, 1
      %p150 = scmp.ne.s32.totalorder %s145, %s147
      %p151 = scmp.eq.s32.totalorder %s22, 0
      %p152 = por %p150, %p151
      %p153 = scmp.ne.s32.totalorder %s145, %s147
      %p154 = scmp.eq.s32.totalorder %s27, 1
      %p155 = por %p153, %p154
      %p156 = scmp.ne.s32.totalorder %s147, %s148
      %p157 = scmp.eq.s32.totalorder %s27, 0
      %p158 = por %p156, %p157
      %p159 = scmp.ne.s32.totalorder %s147, %s148
      %p160 = scmp.eq.s32.totalorder %s28, 1
      %p161 = por %p159, %p160
      %p163 = scmp.ne.s32.totalorder %s148, %s162
      %p164 = scmp.eq.s32.totalorder %s28, 0
      %p165 = por %p163, %p164
      %s167 = sadd.s32 %s166, 1
      %p170 = scmp.eq.s32.totalorder %s22, 1
      %p171 = scmp.ne.s32.totalorder %s166, %s168
      %p172 = scmp.eq.s32.totalorder %s22, 0
      %p173 = por %p171, %p172
      %p174 = scmp.ne.s32.totalorder %s166, %s168
      %p175 = scmp.eq.s32.totalorder %s27, 1
      %p176 = por %p174, %p175
      %p177 = scmp.ne.s32.totalorder %s168, %s169
      %p178 = scmp.eq.s32.totalorder %s27, 0
      %p179 = por %p177, %p178
      %p180 = scmp.ne.s32.totalorder %s168, %s169
      %p181 = scmp.eq.s32.totalorder %s28, 1
      %p182 = por %p180, %p181
      %p184 = scmp.ne.s32.totalorder %s169, %s183
      %p185 = scmp.eq.s32.totalorder %s28, 0
      %p186 = por %p184, %p185
      %s188 = sadd.s32 %s187, 1
      %p191 = scmp.eq.s32.totalorder %s22, 1
      %p192 = scmp.ne.s32.totalorder %s187, %s189
      %p193 = scmp.eq.s32.totalorder %s22, 0
      %p194 = por %p192, %p193
      %p195 = scmp.ne.s32.totalorder %s187, %s189
      %p196 = scmp.eq.s32.totalorder %s27, 1
      %p197 = por %p195, %p196
      %p198 = scmp.ne.s32.totalorder %s189, %s190
      %p199 = scmp.eq.s32.totalorder %s27, 0
      %p200 = por %p198, %p199
      %p201 = scmp.ne.s32.totalorder %s189, %s190
      %p202 = scmp.eq.s32.totalorder %s28, 1
      %p203 = por %p201, %p202
      %p205 = scmp.ne.s32.totalorder %s190, %s204
      %p206 = scmp.eq.s32.totalorder %s28, 0
      %p207 = por %p205, %p206
      %s209 = sadd.s32 %s208, 1
      %p212 = scmp.eq.s32.totalorder %s22, 1
      %p213 = scmp.ne.s32.totalorder %s208, %s210
      %p214 = scmp.eq.s32.totalorder %s22, 0
      %p215 = por %p213, %p214
      %p216 = scmp.ne.s32.totalorder %s208, %s210
      %p217 = scmp.eq.s32.totalorder %s27, 1
      %p218 = por %p216, %p217
      %p219 = scmp.ne.s32.totalorder %s210, %s211
      %p220 = scmp.eq.s32.totalorder %s27, 0
      %p221 = por %p219, %p220
      %p222 = scmp.ne.s32.totalorder %s210, %s211
      %p223 = scmp.eq.s32.totalorder %s28, 1
      %p224 = por %p222, %p223
      %p226 = scmp.ne.s32.totalorder %s211, %s225
      %p227 = scmp.eq.s32.totalorder %s28, 0
      %p228 = por %p226, %p227
      %s230 = sadd.s32 %s229, 1
      %p233 = scmp.eq.s32.totalorder %s22, 1
      %p234 = scmp.ne.s32.totalorder %s229, %s231
      %p235 = scmp.eq.s32.totalorder %s22, 0
      %p236 = por %p234, %p235
      %p237 = scmp.ne.s32.totalorder %s229, %s231
      %p238 = scmp.eq.s32.totalorder %s27, 1
      %p239 = por %p237, %p238
      %p240 = scmp.ne.s32.totalorder %s231, %s232
      %p241 = scmp.eq.s32.totalorder %s27, 0
      %p242 = por %p240, %p241
      %p243 = scmp.ne.s32.totalorder %s231, %s232
      %p244 = scmp.eq.s32.totalorder %s28, 1
      %p245 = por %p243, %p244
      %p247 = scmp.ne.s32.totalorder %s232, %s246
      %p248 = scmp.eq.s32.totalorder %s28, 0
      %p249 = por %p247, %p248
      %s251 = sadd.s32 %s250, 1
      %p254 = scmp.eq.s32.totalorder %s22, 1
      %p255 = scmp.ne.s32.totalorder %s250, %s252
      %p256 = scmp.eq.s32.totalorder %s22, 0
      %p257 = por %p255, %p256
      %p258 = scmp.ne.s32.totalorder %s250, %s252
      %p259 = scmp.eq.s32.totalorder %s27, 1
      %p260 = por %p258, %p259
      %p261 = scmp.ne.s32.totalorder %s252, %s253
      %p262 = scmp.eq.s32.totalorder %s27, 0
      %p263 = por %p261, %p262
      %p264 = scmp.ne.s32.totalorder %s252, %s253
      %p265 = scmp.eq.s32.totalorder %s28, 1
      %p266 = por %p264, %p265
      %p268 = scmp.ne.s32.totalorder %s253, %s267
      %p269 = scmp.eq.s32.totalorder %s28, 0
      %p270 = por %p268, %p269
      %s272 = sadd.s32 %s271, 1
      %p275 = scmp.eq.s32.totalorder %s22, 1
      %p276 = scmp.ne.s32.totalorder %s271, %s273
      %p277 = scmp.eq.s32.totalorder %s22, 0
      %p278 = por %p276, %p277
      %p279 = scmp.ne.s32.totalorder %s271, %s273
      %p280 = scmp.eq.s32.totalorder %s27, 1
      %p281 = por %p279, %p280
      %p282 = scmp.ne.s32.totalorder %s273, %s274
      %p283 = scmp.eq.s32.totalorder %s27, 0
      %p284 = por %p282, %p283
      %p285 = scmp.ne.s32.totalorder %s273, %s274
      %p286 = scmp.eq.s32.totalorder %s28, 1
      %p287 = por %p285, %p286
      %p289 = scmp.ne.s32.totalorder %s274, %s288
      %p290 = scmp.eq.s32.totalorder %s28, 0
      %p291 = por %p289, %p290
      %s293 = sadd.s32 %s292, 1
      %p296 = scmp.eq.s32.totalorder %s22, 1
      %p297 = scmp.ne.s32.totalorder %s292, %s294
      %p298 = scmp.eq.s32.totalorder %s22, 0
      %p299 = por %p297, %p298
      %p300 = scmp.ne.s32.totalorder %s292, %s294
      %p301 = scmp.eq.s32.totalorder %s27, 1
      %p302 = por %p300, %p301
      %p303 = scmp.ne.s32.totalorder %s294, %s295
      %p304 = scmp.eq.s32.totalorder %s27, 0
      %p305 = por %p303, %p304
      %p306 = scmp.ne.s32.totalorder %s294, %s295
      %p307 = scmp.eq.s32.totalorder %s28, 1
      %p308 = por %p306, %p307
      %p310 = scmp.ne.s32.totalorder %s295, %s309
      %p311 = scmp.eq.s32.totalorder %s28, 0
      %p312 = por %p310, %p311
      %s313 = ssub.s32 %s22, %s29
      %p314 = scmp.eq.s32.totalorder %s313, 0
      %s316 = sadd.s32 %s315, 1
      %s317 = scalar_select %p314, %s315, %s316
      %p320 = pneg %p314
      %p321 = scmp.eq.s32.totalorder %s22, 1
      %p322 = por %p320, %p321
      %p323 = scmp.ne.s32.totalorder %s315, %s318
      %p324 = scmp.eq.s32.totalorder %s22, 0
      %p325 = por %p323, %p324
      %p326 = scmp.ne.s32.totalorder %s315, %s318
      %p327 = scmp.eq.s32.totalorder %s27, 1
      %p328 = por %p326, %p327
      %p329 = scmp.ne.s32.totalorder %s318, %s319
      %p330 = scmp.eq.s32.totalorder %s27, 0
      %p331 = por %p329, %p330
      %p332 = scmp.ne.s32.totalorder %s318, %s319
      %p333 = scmp.eq.s32.totalorder %s28, 1
      %p334 = por %p332, %p333
      %p336 = scmp.ne.s32.totalorder %s319, %s335
      %p337 = scmp.eq.s32.totalorder %s28, 0
      %p338 = por %p336, %p337
      %p339 = scmp.le.s32.totalorder 1, %s22
      %p340 = scmp.lt.s32.totalorder %s22, 3
      %p341 = pnand %p339, %p340
      %p342 = pneg %p341
      // Predicated region
      $region9: #{tpu_custom_call.1} parent=5 // pred_check
        _
      $region10: #{tpu_custom_call.1} parent=5 // pred_check_branch
        %344 = sbr.rel (%p341) target = $region12
      $region11: #{tpu_custom_call.1} parent=5 // pred_region
        %s345 = ssub.s32 %s22, 1
        // Predicated region
        $region13: #{tpu_custom_call.1} parent=11 // pred_check
          %p346 = pneg %p95
        $region14: #{tpu_custom_call.1} parent=11 // pred_check_branch
          %348 = sbr.rel (%p346) target = $region16
        $region15: #{tpu_custom_call.1} parent=11 // pred_region
          _
        $region16: #{tpu_custom_call.1} parent=11 // pred_fallthru
          _
        // Predicated region
        $region17: #{tpu_custom_call.1} parent=11 // pred_check
          %p349 = pneg %p116
        $region18: #{tpu_custom_call.1} parent=11 // pred_check_branch
          %351 = sbr.rel (%p349) target = $region20
        $region19: #{tpu_custom_call.1} parent=11 // pred_region
          _
        $region20: #{tpu_custom_call.1} parent=11 // pred_fallthru
          _
        // Predicated region
        $region21: #{tpu_custom_call.1} parent=11 // pred_check
          %p352 = pneg %p137
        $region22: #{tpu_custom_call.1} parent=11 // pred_check_branch
          %354 = sbr.rel (%p352) target = $region24
        $region23: #{tpu_custom_call.1} parent=11 // pred_region
          _
        $region24: #{tpu_custom_call.1} parent=11 // pred_fallthru
          _
        // Predicated region
        $region25: #{tpu_custom_call.1} parent=11 // pred_check
          %p355 = pneg %p158
        $region26: #{tpu_custom_call.1} parent=11 // pred_check_branch
          %357 = sbr.rel (%p355) target = $region28
        $region27: #{tpu_custom_call.1} parent=11 // pred_region
          _
        $region28: #{tpu_custom_call.1} parent=11 // pred_fallthru
          _
        // Predicated region
        $region29: #{tpu_custom_call.1} parent=11 // pred_check
          %p358 = pneg %p179
        $region30: #{tpu_custom_call.1} parent=11 // pred_check_branch
          %360 = sbr.rel (%p358) target = $region32
        $region31: #{tpu_custom_call.1} parent=11 // pred_region
          _
        $region32: #{tpu_custom_call.1} parent=11 // pred_fallthru
          _
        // Predicated region
        $region33: #{tpu_custom_call.1} parent=11 // pred_check
          %p361 = pneg %p200
        $region34: #{tpu_custom_call.1} parent=11 // pred_check_branch
          %363 = sbr.rel (%p361) target = $region36
        $region35: #{tpu_custom_call.1} parent=11 // pred_region
          _
        $region36: #{tpu_custom_call.1} parent=11 // pred_fallthru
          _
        // Predicated region
        $region37: #{tpu_custom_call.1} parent=11 // pred_check
          %p364 = pneg %p221
        $region38: #{tpu_custom_call.1} parent=11 // pred_check_branch
          %366 = sbr.rel (%p364) target = $region40
        $region39: #{tpu_custom_call.1} parent=11 // pred_region
          _
        $region40: #{tpu_custom_call.1} parent=11 // pred_fallthru
          _
        // Predicated region
        $region41: #{tpu_custom_call.1} parent=11 // pred_check
          %p367 = pneg %p242
        $region42: #{tpu_custom_call.1} parent=11 // pred_check_branch
          %369 = sbr.rel (%p367) target = $region44
        $region43: #{tpu_custom_call.1} parent=11 // pred_region
          _
        $region44: #{tpu_custom_call.1} parent=11 // pred_fallthru
          _
        // Predicated region
        $region45: #{tpu_custom_call.1} parent=11 // pred_check
          %p370 = pneg %p263
        $region46: #{tpu_custom_call.1} parent=11 // pred_check_branch
          %372 = sbr.rel (%p370) target = $region48
        $region47: #{tpu_custom_call.1} parent=11 // pred_region
          _
        $region48: #{tpu_custom_call.1} parent=11 // pred_fallthru
          _
        // Predicated region
        $region49: #{tpu_custom_call.1} parent=11 // pred_check
          %p373 = pneg %p284
        $region50: #{tpu_custom_call.1} parent=11 // pred_check_branch
          %375 = sbr.rel (%p373) target = $region52
        $region51: #{tpu_custom_call.1} parent=11 // pred_region
          _
        $region52: #{tpu_custom_call.1} parent=11 // pred_fallthru
          _
        // Predicated region
        $region53: #{tpu_custom_call.1} parent=11 // pred_check
          %p376 = pneg %p305
        $region54: #{tpu_custom_call.1} parent=11 // pred_check_branch
          %378 = sbr.rel (%p376) target = $region56
        $region55: #{tpu_custom_call.1} parent=11 // pred_region
          _
        $region56: #{tpu_custom_call.1} parent=11 // pred_fallthru
          _
      $region12: #{tpu_custom_call.1} parent=5 // pred_fallthru
        _
      %p379 = scmp.lt.s32.totalorder %s22, 2
      // Predicated region
      $region57: #{tpu_custom_call.1} parent=5 // pred_check
        %p380 = pneg %p379
      $region58: #{tpu_custom_call.1} parent=5 // pred_check_branch
        %382 = sbr.rel (%p380) target = $region60
      $region59: #{tpu_custom_call.1} parent=5 // pred_region
        // Predicated region
        $region61: #{tpu_custom_call.1} parent=59 // pred_check
          %p383 = pneg %p42
        $region62: #{tpu_custom_call.1} parent=59 // pred_check_branch
          %385 = sbr.rel (%p383) target = $region64
        $region63: #{tpu_custom_call.1} parent=59 // pred_region
          %s386 = smul.u32 8, %s22
          %p387 = scmp.lt.s32.totalorder %s386, 15
          %s388 = scalar_select %p387, %s386, 15
          %s389 = smul.addr %s388, 2
          %s390 = smul.addr %s389, 8
          %s391 = scalar_lea.vmem %s0, %s390
          %s392 = smul.u32 8, %s22
        $region64: #{tpu_custom_call.1} parent=59 // pred_fallthru
          _
        // Predicated region
        $region65: #{tpu_custom_call.1} parent=59 // pred_check
          %p393 = pneg %p68
        $region66: #{tpu_custom_call.1} parent=59 // pred_check_branch
          %395 = sbr.rel (%p393) target = $region68
        $region67: #{tpu_custom_call.1} parent=59 // pred_region
          %s396 = smul.u32 8, %s22
          %p397 = scmp.lt.s32.totalorder %s396, 15
          %s398 = scalar_select %p397, %s396, 15
          %s399 = smul.addr %s398, 2
          %s400 = smul.addr %s399, 4
          %s401 = scalar_lea.vmem %s1, %s400
          %s402 = smul.u32 8, %s22
        $region68: #{tpu_custom_call.1} parent=59 // pred_fallthru
          _
      $region60: #{tpu_custom_call.1} parent=5 // pred_fallthru
        _
      %p403 = scmp.le.s32.totalorder 1, %s22
      %p404 = scmp.lt.s32.totalorder %s22, 3
      %p405 = pnand %p403, %p404
      %p406 = pneg %p405
      // Predicated region
      $region69: #{tpu_custom_call.1} parent=5 // pred_check
        _
      $region70: #{tpu_custom_call.1} parent=5 // pred_check_branch
        %408 = sbr.rel (%p405) target = $region72
      $region71: #{tpu_custom_call.1} parent=5 // pred_region
        %s409 = ssub.s32 %s22, 1
        %s410 = smul.u32 8, %s27
        %p411 = scmp.lt.s32.totalorder %s410, 15
        %s412 = scalar_select %p411, %s410, 15
        %s413 = smul.addr %s412, 2
        %s414 = smul.addr %s413, 8
        %s415 = scalar_lea.vmem %s0, %s414
        %p416 = pneg %p48
        %p417 = pneg %p45
        %s418 = smul.u32 8, %s27
        %p419 = scmp.lt.s32.totalorder %s418, 15
        %s420 = scalar_select %p419, %s418, 15
        %s421 = smul.addr %s420, 2
        %s422 = smul.addr %s421, 4
        %s423 = scalar_lea.vmem %s1, %s422
        %p424 = pneg %p74
        %p425 = pneg %p71
        %p426 = pneg %p95
        %p427 = pneg %p92
        %p428 = pneg %p116
        %p429 = pneg %p113
        %p430 = pneg %p137
        %p431 = pneg %p134
        %p432 = pneg %p158
        %p433 = pneg %p155
        %p434 = pneg %p179
        %p435 = pneg %p176
        %p436 = pneg %p200
        %p437 = pneg %p197
        %p438 = pneg %p221
        %p439 = pneg %p218
        %p440 = pneg %p242
        %p441 = pneg %p239
        %p442 = pneg %p263
        %p443 = pneg %p260
        %p444 = pneg %p284
        %p445 = pneg %p281
        %p446 = pneg %p305
        %p447 = pneg %p302
        %p448 = pneg %p331
        %p449 = pneg %p328
        %s450 = sand.u32 %s318, 1
        %s451 = scalar_lea.sflag [#allocation3], %s450
        %s452 = sand.u32 %s318, 1
        %s453 = smul.addr %s452, 8
        %s454 = scalar_lea.vmem [#allocation2], %s453
        %s455 = smul.u32 8, %s27
        %p456 = scmp.lt.s32.totalorder %s455, 15
        %s457 = scalar_select %p456, %s455, 15
        %s458 = smul.addr %s457, 2
        %s459 = smul.addr %s458, 8
        %s460 = scalar_lea.vmem %s0, %s459
        %s461 = smul.u32 8, %s27
        %s462 = smul.u32 8, %s27
        %p463 = scmp.lt.s32.totalorder %s462, 15
        %s464 = scalar_select %p463, %s462, 15
        %s465 = smul.addr %s464, 2
        %s466 = smul.addr %s465, 4
        %s467 = scalar_lea.vmem %s1, %s466
        %s468 = smul.u32 8, %s27
        %v470 = vld [vmem:[%s460] sm:$0xff]
        %v471 = vld [vmem:[%s460 + $0x8] sm:$0xff]
        %v472 = vld [vmem:[%s460 + $0x10] sm:$0xff]
        %v473 = vld [vmem:[%s460 + $0x18] sm:$0xff]
        %v474 = vld [vmem:[%s460 + $0x20] sm:$0xff]
        %v475 = vld [vmem:[%s460 + $0x28] sm:$0xff]
        %v476 = vld [vmem:[%s460 + $0x30] sm:$0xff]
        %v477 = vld [vmem:[%s460 + $0x38] sm:$0xff]
        %v478 = vld [vmem:[%s460 + $0x40] sm:$0xff]
        %v479 = vld [vmem:[%s460 + $0x48] sm:$0xff]
        %v480 = vld [vmem:[%s460 + $0x50] sm:$0xff]
        %v481 = vld [vmem:[%s460 + $0x58] sm:$0xff]
        %v482 = vld [vmem:[%s460 + $0x60] sm:$0xff]
        %v483 = vld [vmem:[%s460 + $0x68] sm:$0xff]
        %v484 = vld [vmem:[%s460 + $0x70] sm:$0xff]
        %v485 = vld [vmem:[%s460 + $0x78] sm:$0xff]
        %vm486 = vcmask 7168
        %v487 = vsel %vm486, %v470, 0.0
        %v488 = vsel %vm486, %v471, 0.0
        %v489 = vadd.f32 %v487, %v488
        %v490 = vrot.slane %v489, 4
        %v491 = vadd.f32 %v489, %v490
        %v492 = vrot.slane %v491, 2
        %v493 = vadd.f32 %v491, %v492
        %v494 = vrot.slane %v493, 1
        %v495 = vadd.f32 %v493, %v494
        %v496 = vsel %vm486, %v472, 0.0
        %v497 = vsel %vm486, %v473, 0.0
        %v498 = vadd.f32 %v496, %v497
        %v499 = vrot.slane %v498, 4
        %v500 = vadd.f32 %v498, %v499
        %v501 = vrot.slane %v500, 2
        %v502 = vadd.f32 %v500, %v501
        %v503 = vrot.slane %v502, 1
        %v504 = vadd.f32 %v502, %v503
        %v505 = vsel %vm486, %v474, 0.0
        %v506 = vsel %vm486, %v475, 0.0
        %v507 = vadd.f32 %v505, %v506
        %v508 = vrot.slane %v507, 4
        %v509 = vadd.f32 %v507, %v508
        %v510 = vrot.slane %v509, 2
        %v511 = vadd.f32 %v509, %v510
        %v512 = vrot.slane %v511, 1
        %v513 = vadd.f32 %v511, %v512
        %v514 = vsel %vm486, %v476, 0.0
        %v515 = vsel %vm486, %v477, 0.0
        %v516 = vadd.f32 %v514, %v515
        %v517 = vrot.slane %v516, 4
        %v518 = vadd.f32 %v516, %v517
        %v519 = vrot.slane %v518, 2
        %v520 = vadd.f32 %v518, %v519
        %v521 = vrot.slane %v520, 1
        %v522 = vadd.f32 %v520, %v521
        %v523 = vsel %vm486, %v478, 0.0
        %v524 = vsel %vm486, %v479, 0.0
        %v525 = vadd.f32 %v523, %v524
        %v526 = vrot.slane %v525, 4
        %v527 = vadd.f32 %v525, %v526
        %v528 = vrot.slane %v527, 2
        %v529 = vadd.f32 %v527, %v528
        %v530 = vrot.slane %v529, 1
        %v531 = vadd.f32 %v529, %v530
        %v532 = vsel %vm486, %v480, 0.0
        %v533 = vsel %vm486, %v481, 0.0
        %v534 = vadd.f32 %v532, %v533
        %v535 = vrot.slane %v534, 4
        %v536 = vadd.f32 %v534, %v535
        %v537 = vrot.slane %v536, 2
        %v538 = vadd.f32 %v536, %v537
        %v539 = vrot.slane %v538, 1
        %v540 = vadd.f32 %v538, %v539
        %v541 = vsel %vm486, %v482, 0.0
        %v542 = vsel %vm486, %v483, 0.0
        %v543 = vadd.f32 %v541, %v542
        %v544 = vrot.slane %v543, 4
        %v545 = vadd.f32 %v543, %v544
        %v546 = vrot.slane %v545, 2
        %v547 = vadd.f32 %v545, %v546
        %v548 = vrot.slane %v547, 1
        %v549 = vadd.f32 %v547, %v548
        %v550 = vsel %vm486, %v484, 0.0
        %v551 = vsel %vm486, %v485, 0.0
        %v552 = vadd.f32 %v550, %v551
        %v553 = vrot.slane %v552, 4
        %v554 = vadd.f32 %v552, %v553
        %v555 = vrot.slane %v554, 2
        %v556 = vadd.f32 %v554, %v555
        %v557 = vrot.slane %v556, 1
        %v558 = vadd.f32 %v556, %v557
        %v559 = vlaneseq
        %v560 = vshrl.u32 %v559, 7
        %v561 = vadd.s32 %v560, 8
        %vm562 = vcmp.ne.s32.totalorder %v560, 0
        %vm563 = vcmp.ne.s32.totalorder %v561, 0
        %vm564 = vcmp.ne.s32.totalorder %v560, 15
        %vm565 = vcmp.ne.s32.totalorder %v561, 15
        %v566 = vld [vmem:[%s467] sm:$0xf]
        %v567 = vld [vmem:[%s467 + $0x4] sm:$0xf]
        %v568 = vld [vmem:[%s467 + $0x8] sm:$0xf]
        %v569 = vld [vmem:[%s467 + $0xc] sm:$0xf]
        %v570 = vld [vmem:[%s467 + $0x10] sm:$0xf]
        %v571 = vld [vmem:[%s467 + $0x14] sm:$0xf]
        %v572 = vld [vmem:[%s467 + $0x18] sm:$0xf]
        %v573 = vld [vmem:[%s467 + $0x1c] sm:$0xf]
        %v574 = vld [vmem:[%s467 + $0x20] sm:$0xf]
        %v575 = vld [vmem:[%s467 + $0x24] sm:$0xf]
        %v576 = vld [vmem:[%s467 + $0x28] sm:$0xf]
        %v577 = vld [vmem:[%s467 + $0x2c] sm:$0xf]
        %v578 = vld [vmem:[%s467 + $0x30] sm:$0xf]
        %v579 = vld [vmem:[%s467 + $0x34] sm:$0xf]
        %v580 = vld [vmem:[%s467 + $0x38] sm:$0xf]
        %v581 = vld [vmem:[%s467 + $0x3c] sm:$0xf]
        %v582 = vunpack.c.l.bf16 %v566
        %v583 = vunpack.c.l.bf16 %v567
        %v584 = vunpack.c.l.bf16 %v568
        %v585 = vunpack.c.l.bf16 %v569
        %v586 = vunpack.c.l.bf16 %v570
        %v587 = vunpack.c.l.bf16 %v571
        %v588 = vunpack.c.l.bf16 %v572
        %v589 = vunpack.c.l.bf16 %v573
        %v590 = vunpack.c.l.bf16 %v574
        %v591 = vunpack.c.l.bf16 %v575
        %v592 = vunpack.c.l.bf16 %v576
        %v593 = vunpack.c.l.bf16 %v577
        %v594 = vunpack.c.l.bf16 %v578
        %v595 = vunpack.c.l.bf16 %v579
        %v596 = vunpack.c.l.bf16 %v580
        %v597 = vunpack.c.l.bf16 %v581
        %v598 = vrot.slane %v582, 7
        %v599 = vrot.slane %v583, 7
        %v600 = vrot.slane %v584, 7
        %v601 = vrot.slane %v585, 7
        %v602 = vrot.slane %v586, 7
        %v603 = vrot.slane %v587, 7
        %v604 = vrot.slane %v588, 7
        %v605 = vrot.slane %v589, 7
        %v606 = vrot.slane %v590, 7
        %v607 = vrot.slane %v591, 7
        %v608 = vrot.slane %v592, 7
        %v609 = vrot.slane %v593, 7
        %v610 = vrot.slane %v594, 7
        %v611 = vrot.slane %v595, 7
        %v612 = vrot.slane %v596, 7
        %v613 = vrot.slane %v597, 7
        %vm614 = vcmp.lt.s32.totalorder %v560, 1
        %v615 = vsel %vm614, %v612, %v613
        %v616 = vsel %vm614, %v611, %v612
        %v617 = vsel %vm614, %v610, %v611
        %v618 = vsel %vm614, %v609, %v610
        %v619 = vsel %vm614, %v608, %v609
        %v620 = vsel %vm614, %v607, %v608
        %v621 = vsel %vm614, %v606, %v607
        %v622 = vsel %vm614, %v605, %v606
        %v623 = vsel %vm614, %v604, %v605
        %v624 = vsel %vm614, %v603, %v604
        %v625 = vsel %vm614, %v602, %v603
        %v626 = vsel %vm614, %v601, %v602
        %v627 = vsel %vm614, %v600, %v601
        %v628 = vsel %vm614, %v599, %v600
        %v629 = vsel %vm614, %v598, %v599
        %v630 = vsel %vm614, %v613, %v598
        %v631 = vsel %vm562, 1, 0
        %v632 = vsel %vm563, 1, 0
        %vm633 = vcmp.eq.s32.totalorder %v631, 1
        %vm634 = vcmp.eq.s32.totalorder %v632, 1
        %v635 = vsel %vm633, %v630, 0.0
        %v636 = vsel %vm634, %v629, 0.0
        %v637 = vsel %vm633, %v628, 0.0
        %v638 = vsel %vm634, %v627, 0.0
        %v639 = vsel %vm633, %v626, 0.0
        %v640 = vsel %vm634, %v625, 0.0
        %v641 = vsel %vm633, %v624, 0.0
        %v642 = vsel %vm634, %v623, 0.0
        %v643 = vsel %vm633, %v622, 0.0
        %v644 = vsel %vm634, %v621, 0.0
        %v645 = vsel %vm633, %v620, 0.0
        %v646 = vsel %vm634, %v619, 0.0
        %v647 = vsel %vm633, %v618, 0.0
        %v648 = vsel %vm634, %v617, 0.0
        %v649 = vsel %vm633, %v616, 0.0
        %v650 = vsel %vm634, %v615, 0.0
        %v651 = vrot.slane %v582, 1
        %v652 = vrot.slane %v583, 1
        %v653 = vrot.slane %v584, 1
        %v654 = vrot.slane %v585, 1
        %v655 = vrot.slane %v586, 1
        %v656 = vrot.slane %v587, 1
        %v657 = vrot.slane %v588, 1
        %v658 = vrot.slane %v589, 1
        %v659 = vrot.slane %v590, 1
        %v660 = vrot.slane %v591, 1
        %v661 = vrot.slane %v592, 1
        %v662 = vrot.slane %v593, 1
        %v663 = vrot.slane %v594, 1
        %v664 = vrot.slane %v595, 1
        %v665 = vrot.slane %v596, 1
        %v666 = vrot.slane %v597, 1
        %vm667 = vcmp.lt.s32.totalorder %v560, 7
        %v668 = vsel %vm667, %v665, %v666
        %v669 = vsel %vm667, %v664, %v665
        %v670 = vsel %vm667, %v663, %v664
        %v671 = vsel %vm667, %v662, %v663
        %v672 = vsel %vm667, %v661, %v662
        %v673 = vsel %vm667, %v660, %v661
        %v674 = vsel %vm667, %v659, %v660
        %v675 = vsel %vm667, %v658, %v659
        %v676 = vsel %vm667, %v657, %v658
        %v677 = vsel %vm667, %v656, %v657
        %v678 = vsel %vm667, %v655, %v656
        %v679 = vsel %vm667, %v654, %v655
        %v680 = vsel %vm667, %v653, %v654
        %v681 = vsel %vm667, %v652, %v653
        %v682 = vsel %vm667, %v651, %v652
        %v683 = vsel %vm667, %v666, %v651
        %v684 = vsel %vm564, 1, 0
        %v685 = vsel %vm565, 1, 0
        %vm686 = vcmp.eq.s32.totalorder %v684, 1
        %vm687 = vcmp.eq.s32.totalorder %v685, 1
        %v688 = vsel %vm686, %v682, 0.0
        %v689 = vsel %vm687, %v681, 0.0
        %v690 = vsel %vm686, %v680, 0.0
        %v691 = vsel %vm687, %v679, 0.0
        %v692 = vsel %vm686, %v678, 0.0
        %v693 = vsel %vm687, %v677, 0.0
        %v694 = vsel %vm686, %v676, 0.0
        %v695 = vsel %vm687, %v675, 0.0
        %v696 = vsel %vm686, %v674, 0.0
        %v697 = vsel %vm687, %v673, 0.0
        %v698 = vsel %vm686, %v672, 0.0
        %v699 = vsel %vm687, %v671, 0.0
        %v700 = vsel %vm686, %v670, 0.0
        %v701 = vsel %vm687, %v669, 0.0
        %v702 = vsel %vm686, %v668, 0.0
        %v703 = vsel %vm687, %v683, 0.0
        %720 = vrot.lane.b32.xlu0 %v582, 6
        %v721 = vpop.permute.xlu0 %720
        %722 = vrot.lane.b32.xlu0 %v583, 6
        %v723 = vpop.permute.xlu0 %722
        %724 = vrot.lane.b32.xlu0 %v584, 6
        %v725 = vpop.permute.xlu0 %724
        %726 = vrot.lane.b32.xlu0 %v585, 6
        %v727 = vpop.permute.xlu0 %726
        %728 = vrot.lane.b32.xlu0 %v586, 6
        %v729 = vpop.permute.xlu0 %728
        %730 = vrot.lane.b32.xlu0 %v587, 6
        %v731 = vpop.permute.xlu0 %730
        %732 = vrot.lane.b32.xlu0 %v588, 6
        %v733 = vpop.permute.xlu0 %732
        %734 = vrot.lane.b32.xlu0 %v589, 6
        %v735 = vpop.permute.xlu0 %734
        %736 = vrot.lane.b32.xlu0 %v590, 6
        %v737 = vpop.permute.xlu0 %736
        %738 = vrot.lane.b32.xlu0 %v591, 6
        %v739 = vpop.permute.xlu0 %738
        %740 = vrot.lane.b32.xlu0 %v592, 6
        %v741 = vpop.permute.xlu0 %740
        %742 = vrot.lane.b32.xlu0 %v593, 6
        %v743 = vpop.permute.xlu0 %742
        %744 = vrot.lane.b32.xlu0 %v594, 6
        %v745 = vpop.permute.xlu0 %744
        %746 = vrot.lane.b32.xlu0 %v595, 6
        %v747 = vpop.permute.xlu0 %746
        %748 = vrot.lane.b32.xlu0 %v596, 6
        %v749 = vpop.permute.xlu0 %748
        %750 = vrot.lane.b32.xlu0 %v597, 6
        %v751 = vpop.permute.xlu0 %750
        %784 = vrot.lane.b32.xlu0 %v688, 12
        %v785 = vpop.permute.xlu0 %784
        %786 = vrot.lane.b32.xlu0 %v689, 12
        %v787 = vpop.permute.xlu0 %786
        %788 = vrot.lane.b32.xlu0 %v690, 12
        %v789 = vpop.permute.xlu0 %788
        %790 = vrot.lane.b32.xlu0 %v691, 12
        %v791 = vpop.permute.xlu0 %790
        %792 = vrot.lane.b32.xlu0 %v692, 12
        %v793 = vpop.permute.xlu0 %792
        %794 = vrot.lane.b32.xlu0 %v693, 12
        %v795 = vpop.permute.xlu0 %794
        %796 = vrot.lane.b32.xlu0 %v694, 12
        %v797 = vpop.permute.xlu0 %796
        %798 = vrot.lane.b32.xlu0 %v695, 12
        %v799 = vpop.permute.xlu0 %798
        %800 = vrot.lane.b32.xlu0 %v696, 12
        %v801 = vpop.permute.xlu0 %800
        %802 = vrot.lane.b32.xlu0 %v697, 12
        %v803 = vpop.permute.xlu0 %802
        %804 = vrot.lane.b32.xlu0 %v698, 12
        %v805 = vpop.permute.xlu0 %804
        %806 = vrot.lane.b32.xlu0 %v699, 12
        %v807 = vpop.permute.xlu0 %806
        %808 = vrot.lane.b32.xlu0 %v700, 12
        %v809 = vpop.permute.xlu0 %808
        %810 = vrot.lane.b32.xlu0 %v701, 12
        %v811 = vpop.permute.xlu0 %810
        %812 = vrot.lane.b32.xlu0 %v702, 12
        %v813 = vpop.permute.xlu0 %812
        %814 = vrot.lane.b32.xlu0 %v703, 12
        %v815 = vpop.permute.xlu0 %814
        %vm832 = vcmask 48128
        %v833 = vsel %vm832, %v635, %v721
        %v834 = vsel %vm832, %v636, %v723
        %v835 = vsel %vm832, %v637, %v725
        %v836 = vsel %vm832, %v638, %v727
        %v837 = vsel %vm832, %v639, %v729
        %v838 = vsel %vm832, %v640, %v731
        %v839 = vsel %vm832, %v641, %v733
        %v840 = vsel %vm832, %v642, %v735
        %v841 = vsel %vm832, %v643, %v737
        %v842 = vsel %vm832, %v644, %v739
        %v843 = vsel %vm832, %v645, %v741
        %v844 = vsel %vm832, %v646, %v743
        %v845 = vsel %vm832, %v647, %v745
        %v846 = vsel %vm832, %v648, %v747
        %v847 = vsel %vm832, %v649, %v749
        %v848 = vsel %vm832, %v650, %v751
        %vm849 = vcmask 97280
        %v850 = vsel %vm849, %v833, %v785
        %v851 = vsel %vm849, %v834, %v787
        %v852 = vsel %vm849, %v835, %v789
        %v853 = vsel %vm849, %v836, %v791
        %v854 = vsel %vm849, %v837, %v793
        %v855 = vsel %vm849, %v838, %v795
        %v856 = vsel %vm849, %v839, %v797
        %v857 = vsel %vm849, %v840, %v799
        %v858 = vsel %vm849, %v841, %v801
        %v859 = vsel %vm849, %v842, %v803
        %v860 = vsel %vm849, %v843, %v805
        %v861 = vsel %vm849, %v844, %v807
        %v862 = vsel %vm849, %v845, %v809
        %v863 = vsel %vm849, %v846, %v811
        %v864 = vsel %vm849, %v847, %v813
        %v865 = vsel %vm849, %v848, %v815
        %v866 = vpack.c.bf16 %v851, %v850
        %v867 = vpack.c.bf16 %v853, %v852
        %v868 = vpack.c.bf16 %v855, %v854
        %v869 = vpack.c.bf16 %v857, %v856
        %v870 = vpack.c.bf16 %v859, %v858
        %v871 = vpack.c.bf16 %v861, %v860
        %v872 = vpack.c.bf16 %v863, %v862
        %v873 = vpack.c.bf16 %v865, %v864
        %v874 = vld [vmem:[%s2] sm:$0xf]
        %v875 = vld [vmem:[%s2 + $0x4] sm:$0xf]
        %v876 = vld [vmem:[%s2 + $0x8] sm:$0x1]
        %v880 = vunpack.c.l.b16 %v874
        %v881 = vunpack.c.l.b16 %v875
        %v882 = vunpack.c.l.b16 %v876
        %v883 = vpack.c.b16 %v881, %v880
        %v884 = vpack.c.b16 %v882, %v882
        %vm886 = vcmask 146432
        %v888 = vsel %vm886, %v866, 0
        %v891 = vsel %vm886, %v867, 0
        %v894 = vsel %vm886, %v868, 0
        %v897 = vsel %vm886, %v869, 0
        %v900 = vsel %vm886, %v870, 0
        %v903 = vsel %vm886, %v871, 0
        %v906 = vsel %vm886, %v872, 0
        %v909 = vsel %vm886, %v873, 0
        %vm911 = vcmask 1040384
        %v913 = vsel %vm911, %v884, 0
        %915 = vmatpush.bf16.msra.mxu0 0
        %916 = vmatpush.bf16.msra.mxu0 0
        %917 = vmatpush.bf16.msra.mxu0 0
        %918 = vmatpush.bf16.msra.mxu0 0
        %919 = vmatpush.bf16.msra.mxu0 0
        %920 = vmatpush.bf16.msra.mxu0 0
        %921 = vmatpush.bf16.msra.mxu0 %v913
        %922 = vmatpush.bf16.msra.mxu0 %v883
        %923 = vmatmul.bf16.gmra.mxu0 %v888
        %v924 = vpop.f32.mrf.mxu0
        %v925 = vadd.f32 0.0, %v924
        %v926 = vpop.f32.mrf.mxu0
        %v927 = vadd.f32 0.0, %v926
        %928 = vmatmul.bf16.gmra.mxu0 %v891
        %v929 = vpop.f32.mrf.mxu0
        %v930 = vadd.f32 0.0, %v929
        %v931 = vpop.f32.mrf.mxu0
        %v932 = vadd.f32 0.0, %v931
        %933 = vmatmul.bf16.gmra.mxu0 %v894
        %v934 = vpop.f32.mrf.mxu0
        %v935 = vadd.f32 0.0, %v934
        %v936 = vpop.f32.mrf.mxu0
        %v937 = vadd.f32 0.0, %v936
        %938 = vmatmul.bf16.gmra.mxu0 %v897
        %v939 = vpop.f32.mrf.mxu0
        %v940 = vadd.f32 0.0, %v939
        %v941 = vpop.f32.mrf.mxu0
        %v942 = vadd.f32 0.0, %v941
        %943 = vmatmul.bf16.gmra.mxu0 %v900
        %v944 = vpop.f32.mrf.mxu0
        %v945 = vadd.f32 0.0, %v944
        %v946 = vpop.f32.mrf.mxu0
        %v947 = vadd.f32 0.0, %v946
        %948 = vmatmul.bf16.gmra.mxu0 %v903
        %v949 = vpop.f32.mrf.mxu0
        %v950 = vadd.f32 0.0, %v949
        %v951 = vpop.f32.mrf.mxu0
        %v952 = vadd.f32 0.0, %v951
        %953 = vmatmul.bf16.gmra.mxu0 %v906
        %v954 = vpop.f32.mrf.mxu0
        %v955 = vadd.f32 0.0, %v954
        %v956 = vpop.f32.mrf.mxu0
        %v957 = vadd.f32 0.0, %v956
        %958 = vmatmul.bf16.gmra.mxu0 %v909
        %v959 = vpop.f32.mrf.mxu0
        %v960 = vadd.f32 0.0, %v959
        %v961 = vpop.f32.mrf.mxu0
        %v962 = vadd.f32 0.0, %v961
        %963 = vdwg.mxu0
        %v964 = vld [vmem:[%s3] sm:$0x1]
        %v966 = vperm.slane %v964, 0
        %v968 = vmul.f32 %v925, %v966
        %v969 = vmul.f32 %v927, %v966
        %v970 = vmul.f32 %v930, %v966
        %v971 = vmul.f32 %v932, %v966
        %v972 = vmul.f32 %v935, %v966
        %v973 = vmul.f32 %v937, %v966
        %v974 = vmul.f32 %v940, %v966
        %v975 = vmul.f32 %v942, %v966
        %v976 = vmul.f32 %v945, %v966
        %v977 = vmul.f32 %v947, %v966
        %v978 = vmul.f32 %v950, %v966
        %v979 = vmul.f32 %v952, %v966
        %v980 = vmul.f32 %v955, %v966
        %v981 = vmul.f32 %v957, %v966
        %v982 = vmul.f32 %v960, %v966
        %v983 = vmul.f32 %v962, %v966
        %v984 = vld [vmem:[%s4] sm:$0x1]
        %v986 = vperm.slane %v984, 0
        %v988 = vadd.f32 %v968, %v986
        %v989 = vadd.f32 %v969, %v986
        %v990 = vadd.f32 %v970, %v986
        %v991 = vadd.f32 %v971, %v986
        %v992 = vadd.f32 %v972, %v986
        %v993 = vadd.f32 %v973, %v986
        %v994 = vadd.f32 %v974, %v986
        %v995 = vadd.f32 %v975, %v986
        %v996 = vadd.f32 %v976, %v986
        %v997 = vadd.f32 %v977, %v986
        %v998 = vadd.f32 %v978, %v986
        %v999 = vadd.f32 %v979, %v986
        %v1000 = vadd.f32 %v980, %v986
        %v1001 = vadd.f32 %v981, %v986
        %v1002 = vadd.f32 %v982, %v986
        %v1003 = vadd.f32 %v983, %v986
        %vm1004 = vcmp.gt.f32.partialorder %v988, 0.0
        %vm1005 = vcmp.gt.f32.partialorder %v989, 0.0
        %vm1006 = vcmp.gt.f32.partialorder %v990, 0.0
        %vm1007 = vcmp.gt.f32.partialorder %v991, 0.0
        %vm1008 = vcmp.gt.f32.partialorder %v992, 0.0
        %vm1009 = vcmp.gt.f32.partialorder %v993, 0.0
        %vm1010 = vcmp.gt.f32.partialorder %v994, 0.0
        %vm1011 = vcmp.gt.f32.partialorder %v995, 0.0
        %vm1012 = vcmp.gt.f32.partialorder %v996, 0.0
        %vm1013 = vcmp.gt.f32.partialorder %v997, 0.0
        %vm1014 = vcmp.gt.f32.partialorder %v998, 0.0
        %vm1015 = vcmp.gt.f32.partialorder %v999, 0.0
        %vm1016 = vcmp.gt.f32.partialorder %v1000, 0.0
        %vm1017 = vcmp.gt.f32.partialorder %v1001, 0.0
        %vm1018 = vcmp.gt.f32.partialorder %v1002, 0.0
        %vm1019 = vcmp.gt.f32.partialorder %v1003, 0.0
        %v1020 = vmul.f32 %v988, 0.1
        %v1021 = vmul.f32 %v989, 0.1
        %v1022 = vmul.f32 %v990, 0.1
        %v1023 = vmul.f32 %v991, 0.1
        %v1024 = vmul.f32 %v992, 0.1
        %v1025 = vmul.f32 %v993, 0.1
        %v1026 = vmul.f32 %v994, 0.1
        %v1027 = vmul.f32 %v995, 0.1
        %v1028 = vmul.f32 %v996, 0.1
        %v1029 = vmul.f32 %v997, 0.1
        %v1030 = vmul.f32 %v998, 0.1
        %v1031 = vmul.f32 %v999, 0.1
        %v1032 = vmul.f32 %v1000, 0.1
        %v1033 = vmul.f32 %v1001, 0.1
        %v1034 = vmul.f32 %v1002, 0.1
        %v1035 = vmul.f32 %v1003, 0.1
        %v1036 = vsel %vm1004, %v988, %v1020
        %v1037 = vsel %vm1005, %v989, %v1021
        %v1038 = vsel %vm1006, %v990, %v1022
        %v1039 = vsel %vm1007, %v991, %v1023
        %v1040 = vsel %vm1008, %v992, %v1024
        %v1041 = vsel %vm1009, %v993, %v1025
        %v1042 = vsel %vm1010, %v994, %v1026
        %v1043 = vsel %vm1011, %v995, %v1027
        %v1044 = vsel %vm1012, %v996, %v1028
        %v1045 = vsel %vm1013, %v997, %v1029
        %v1046 = vsel %vm1014, %v998, %v1030
        %v1047 = vsel %vm1015, %v999, %v1031
        %v1048 = vsel %vm1016, %v1000, %v1032
        %v1049 = vsel %vm1017, %v1001, %v1033
        %v1050 = vsel %vm1018, %v1002, %v1034
        %v1051 = vsel %vm1019, %v1003, %v1035
        %1053 = vset.pattern.permute.xlu0 0
        %1054 = vperm.xlu0 %1053, %v470
        %v1055 = vpop.permute.xlu0 %1054
        %1058 = vset.pattern.permute.xlu0 0
        %1059 = vperm.xlu0 %1058, %v471
        %v1060 = vpop.permute.xlu0 %1059
        %1063 = vset.pattern.permute.xlu0 0
        %1064 = vperm.xlu0 %1063, %v472
        %v1065 = vpop.permute.xlu0 %1064
        %1068 = vset.pattern.permute.xlu0 0
        %1069 = vperm.xlu0 %1068, %v473
        %v1070 = vpop.permute.xlu0 %1069
        %1073 = vset.pattern.permute.xlu0 0
        %1074 = vperm.xlu0 %1073, %v474
        %v1075 = vpop.permute.xlu0 %1074
        %1078 = vset.pattern.permute.xlu0 0
        %1079 = vperm.xlu0 %1078, %v475
        %v1080 = vpop.permute.xlu0 %1079
        %1083 = vset.pattern.permute.xlu0 0
        %1084 = vperm.xlu0 %1083, %v476
        %v1085 = vpop.permute.xlu0 %1084
        %1088 = vset.pattern.permute.xlu0 0
        %1089 = vperm.xlu0 %1088, %v477
        %v1090 = vpop.permute.xlu0 %1089
        %1093 = vset.pattern.permute.xlu0 0
        %1094 = vperm.xlu0 %1093, %v478
        %v1095 = vpop.permute.xlu0 %1094
        %1098 = vset.pattern.permute.xlu0 0
        %1099 = vperm.xlu0 %1098, %v479
        %v1100 = vpop.permute.xlu0 %1099
        %1103 = vset.pattern.permute.xlu0 0
        %1104 = vperm.xlu0 %1103, %v480
        %v1105 = vpop.permute.xlu0 %1104
        %1108 = vset.pattern.permute.xlu0 0
        %1109 = vperm.xlu0 %1108, %v481
        %v1110 = vpop.permute.xlu0 %1109
        %1113 = vset.pattern.permute.xlu0 0
        %1114 = vperm.xlu0 %1113, %v482
        %v1115 = vpop.permute.xlu0 %1114
        %1118 = vset.pattern.permute.xlu0 0
        %1119 = vperm.xlu0 %1118, %v483
        %v1120 = vpop.permute.xlu0 %1119
        %1123 = vset.pattern.permute.xlu0 0
        %1124 = vperm.xlu0 %1123, %v484
        %v1125 = vpop.permute.xlu0 %1124
        %1128 = vset.pattern.permute.xlu0 0
        %1129 = vperm.xlu0 %1128, %v485
        %v1130 = vpop.permute.xlu0 %1129
        %v1132 = vmul.f32 %v1036, %v1055
        %v1133 = vmul.f32 %v1037, %v1060
        %v1134 = vmul.f32 %v1038, %v1065
        %v1135 = vmul.f32 %v1039, %v1070
        %v1136 = vmul.f32 %v1040, %v1075
        %v1137 = vmul.f32 %v1041, %v1080
        %v1138 = vmul.f32 %v1042, %v1085
        %v1139 = vmul.f32 %v1043, %v1090
        %v1140 = vmul.f32 %v1044, %v1095
        %v1141 = vmul.f32 %v1045, %v1100
        %v1142 = vmul.f32 %v1046, %v1105
        %v1143 = vmul.f32 %v1047, %v1110
        %v1144 = vmul.f32 %v1048, %v1115
        %v1145 = vmul.f32 %v1049, %v1120
        %v1146 = vmul.f32 %v1050, %v1125
        %v1147 = vmul.f32 %v1051, %v1130
        %v1148 = vrot.slane %v1132, 7
        %v1149 = vrot.slane %v1133, 7
        %v1150 = vrot.slane %v1134, 7
        %v1151 = vrot.slane %v1135, 7
        %v1152 = vrot.slane %v1136, 7
        %v1153 = vrot.slane %v1137, 7
        %v1154 = vrot.slane %v1138, 7
        %v1155 = vrot.slane %v1139, 7
        %v1156 = vrot.slane %v1140, 7
        %v1157 = vrot.slane %v1141, 7
        %v1158 = vrot.slane %v1142, 7
        %v1159 = vrot.slane %v1143, 7
        %v1160 = vrot.slane %v1144, 7
        %v1161 = vrot.slane %v1145, 7
        %v1162 = vrot.slane %v1146, 7
        %v1163 = vrot.slane %v1147, 7
        %v1164 = vsel %vm614, %v1162, %v1163
        %v1165 = vsel %vm614, %v1161, %v1162
        %v1166 = vsel %vm614, %v1160, %v1161
        %v1167 = vsel %vm614, %v1159, %v1160
        %v1168 = vsel %vm614, %v1158, %v1159
        %v1169 = vsel %vm614, %v1157, %v1158
        %v1170 = vsel %vm614, %v1156, %v1157
        %v1171 = vsel %vm614, %v1155, %v1156
        %v1172 = vsel %vm614, %v1154, %v1155
        %v1173 = vsel %vm614, %v1153, %v1154
        %v1174 = vsel %vm614, %v1152, %v1153
        %v1175 = vsel %vm614, %v1151, %v1152
        %v1176 = vsel %vm614, %v1150, %v1151
        %v1177 = vsel %vm614, %v1149, %v1150
        %v1178 = vsel %vm614, %v1148, %v1149
        %v1179 = vsel %vm614, %v1163, %v1148
        %v1180 = vsel %vm633, %v1179, 0.0
        %v1181 = vsel %vm634, %v1178, 0.0
        %v1182 = vsel %vm633, %v1177, 0.0
        %v1183 = vsel %vm634, %v1176, 0.0
        %v1184 = vsel %vm633, %v1175, 0.0
        %v1185 = vsel %vm634, %v1174, 0.0
        %v1186 = vsel %vm633, %v1173, 0.0
        %v1187 = vsel %vm634, %v1172, 0.0
        %v1188 = vsel %vm633, %v1171, 0.0
        %v1189 = vsel %vm634, %v1170, 0.0
        %v1190 = vsel %vm633, %v1169, 0.0
        %v1191 = vsel %vm634, %v1168, 0.0
        %v1192 = vsel %vm633, %v1167, 0.0
        %v1193 = vsel %vm634, %v1166, 0.0
        %v1194 = vsel %vm633, %v1165, 0.0
        %v1195 = vsel %vm634, %v1164, 0.0
        %v1196 = vrot.slane %v1132, 1
        %v1197 = vrot.slane %v1133, 1
        %v1198 = vrot.slane %v1134, 1
        %v1199 = vrot.slane %v1135, 1
        %v1200 = vrot.slane %v1136, 1
        %v1201 = vrot.slane %v1137, 1
        %v1202 = vrot.slane %v1138, 1
        %v1203 = vrot.slane %v1139, 1
        %v1204 = vrot.slane %v1140, 1
        %v1205 = vrot.slane %v1141, 1
        %v1206 = vrot.slane %v1142, 1
        %v1207 = vrot.slane %v1143, 1
        %v1208 = vrot.slane %v1144, 1
        %v1209 = vrot.slane %v1145, 1
        %v1210 = vrot.slane %v1146, 1
        %v1211 = vrot.slane %v1147, 1
        %v1212 = vsel %vm667, %v1210, %v1211
        %v1213 = vsel %vm667, %v1209, %v1210
        %v1214 = vsel %vm667, %v1208, %v1209
        %v1215 = vsel %vm667, %v1207, %v1208
        %v1216 = vsel %vm667, %v1206, %v1207
        %v1217 = vsel %vm667, %v1205, %v1206
        %v1218 = vsel %vm667, %v1204, %v1205
        %v1219 = vsel %vm667, %v1203, %v1204
        %v1220 = vsel %vm667, %v1202, %v1203
        %v1221 = vsel %vm667, %v1201, %v1202
        %v1222 = vsel %vm667, %v1200, %v1201
        %v1223 = vsel %vm667, %v1199, %v1200
        %v1224 = vsel %vm667, %v1198, %v1199
        %v1225 = vsel %vm667, %v1197, %v1198
        %v1226 = vsel %vm667, %v1196, %v1197
        %v1227 = vsel %vm667, %v1211, %v1196
        %v1228 = vsel %vm686, %v1226, 0.0
        %v1229 = vsel %vm687, %v1225, 0.0
        %v1230 = vsel %vm686, %v1224, 0.0
        %v1231 = vsel %vm687, %v1223, 0.0
        %v1232 = vsel %vm686, %v1222, 0.0
        %v1233 = vsel %vm687, %v1221, 0.0
        %v1234 = vsel %vm686, %v1220, 0.0
        %v1235 = vsel %vm687, %v1219, 0.0
        %v1236 = vsel %vm686, %v1218, 0.0
        %v1237 = vsel %vm687, %v1217, 0.0
        %v1238 = vsel %vm686, %v1216, 0.0
        %v1239 = vsel %vm687, %v1215, 0.0
        %v1240 = vsel %vm686, %v1214, 0.0
        %v1241 = vsel %vm687, %v1213, 0.0
        %v1242 = vsel %vm686, %v1212, 0.0
        %v1243 = vsel %vm687, %v1227, 0.0
        %1260 = vrot.lane.b32.xlu0 %v1132, 8
        %v1261 = vpop.permute.xlu0 %1260
        %1262 = vrot.lane.b32.xlu0 %v1133, 8
        %v1263 = vpop.permute.xlu0 %1262
        %1264 = vrot.lane.b32.xlu0 %v1134, 8
        %v1265 = vpop.permute.xlu0 %1264
        %1266 = vrot.lane.b32.xlu0 %v1135, 8
        %v1267 = vpop.permute.xlu0 %1266
        %1268 = vrot.lane.b32.xlu0 %v1136, 8
        %v1269 = vpop.permute.xlu0 %1268
        %1270 = vrot.lane.b32.xlu0 %v1137, 8
        %v1271 = vpop.permute.xlu0 %1270
        %1272 = vrot.lane.b32.xlu0 %v1138, 8
        %v1273 = vpop.permute.xlu0 %1272
        %1274 = vrot.lane.b32.xlu0 %v1139, 8
        %v1275 = vpop.permute.xlu0 %1274
        %1276 = vrot.lane.b32.xlu0 %v1140, 8
        %v1277 = vpop.permute.xlu0 %1276
        %1278 = vrot.lane.b32.xlu0 %v1141, 8
        %v1279 = vpop.permute.xlu0 %1278
        %1280 = vrot.lane.b32.xlu0 %v1142, 8
        %v1281 = vpop.permute.xlu0 %1280
        %1282 = vrot.lane.b32.xlu0 %v1143, 8
        %v1283 = vpop.permute.xlu0 %1282
        %1284 = vrot.lane.b32.xlu0 %v1144, 8
        %v1285 = vpop.permute.xlu0 %1284
        %1286 = vrot.lane.b32.xlu0 %v1145, 8
        %v1287 = vpop.permute.xlu0 %1286
        %1288 = vrot.lane.b32.xlu0 %v1146, 8
        %v1289 = vpop.permute.xlu0 %1288
        %1290 = vrot.lane.b32.xlu0 %v1147, 8
        %v1291 = vpop.permute.xlu0 %1290
        %1324 = vrot.lane.b32.xlu0 %v1228, 16
        %v1325 = vpop.permute.xlu0 %1324
        %1326 = vrot.lane.b32.xlu0 %v1229, 16
        %v1327 = vpop.permute.xlu0 %1326
        %1328 = vrot.lane.b32.xlu0 %v1230, 16
        %v1329 = vpop.permute.xlu0 %1328
        %1330 = vrot.lane.b32.xlu0 %v1231, 16
        %v1331 = vpop.permute.xlu0 %1330
        %1332 = vrot.lane.b32.xlu0 %v1232, 16
        %v1333 = vpop.permute.xlu0 %1332
        %1334 = vrot.lane.b32.xlu0 %v1233, 16
        %v1335 = vpop.permute.xlu0 %1334
        %1336 = vrot.lane.b32.xlu0 %v1234, 16
        %v1337 = vpop.permute.xlu0 %1336
        %1338 = vrot.lane.b32.xlu0 %v1235, 16
        %v1339 = vpop.permute.xlu0 %1338
        %1340 = vrot.lane.b32.xlu0 %v1236, 16
        %v1341 = vpop.permute.xlu0 %1340
        %1342 = vrot.lane.b32.xlu0 %v1237, 16
        %v1343 = vpop.permute.xlu0 %1342
        %1344 = vrot.lane.b32.xlu0 %v1238, 16
        %v1345 = vpop.permute.xlu0 %1344
        %1346 = vrot.lane.b32.xlu0 %v1239, 16
        %v1347 = vpop.permute.xlu0 %1346
        %1348 = vrot.lane.b32.xlu0 %v1240, 16
        %v1349 = vpop.permute.xlu0 %1348
        %1350 = vrot.lane.b32.xlu0 %v1241, 16
        %v1351 = vpop.permute.xlu0 %1350
        %1352 = vrot.lane.b32.xlu0 %v1242, 16
        %v1353 = vpop.permute.xlu0 %1352
        %1354 = vrot.lane.b32.xlu0 %v1243, 16
        %v1355 = vpop.permute.xlu0 %1354
        %vm1372 = vcmask 64512
        %v1373 = vsel %vm1372, %v1180, %v1261
        %v1374 = vsel %vm1372, %v1181, %v1263
        %v1375 = vsel %vm1372, %v1182, %v1265
        %v1376 = vsel %vm1372, %v1183, %v1267
        %v1377 = vsel %vm1372, %v1184, %v1269
        %v1378 = vsel %vm1372, %v1185, %v1271
        %v1379 = vsel %vm1372, %v1186, %v1273
        %v1380 = vsel %vm1372, %v1187, %v1275
        %v1381 = vsel %vm1372, %v1188, %v1277
        %v1382 = vsel %vm1372, %v1189, %v1279
        %v1383 = vsel %vm1372, %v1190, %v1281
        %v1384 = vsel %vm1372, %v1191, %v1283
        %v1385 = vsel %vm1372, %v1192, %v1285
        %v1386 = vsel %vm1372, %v1193, %v1287
        %v1387 = vsel %vm1372, %v1194, %v1289
        %v1388 = vsel %vm1372, %v1195, %v1291
        %vm1389 = vcmask 130048
        %v1390 = vsel %vm1389, %v1373, %v1325
        %v1391 = vsel %vm1389, %v1374, %v1327
        %v1392 = vsel %vm1389, %v1375, %v1329
        %v1393 = vsel %vm1389, %v1376, %v1331
        %v1394 = vsel %vm1389, %v1377, %v1333
        %v1395 = vsel %vm1389, %v1378, %v1335
        %v1396 = vsel %vm1389, %v1379, %v1337
        %v1397 = vsel %vm1389, %v1380, %v1339
        %v1398 = vsel %vm1389, %v1381, %v1341
        %v1399 = vsel %vm1389, %v1382, %v1343
        %v1400 = vsel %vm1389, %v1383, %v1345
        %v1401 = vsel %vm1389, %v1384, %v1347
        %v1402 = vsel %vm1389, %v1385, %v1349
        %v1403 = vsel %vm1389, %v1386, %v1351
        %v1404 = vsel %vm1389, %v1387, %v1353
        %v1405 = vsel %vm1389, %v1388, %v1355
        %v1406 = vpack.c.bf16 %v1391, %v1390
        %v1407 = vpack.c.bf16 %v1393, %v1392
        %v1408 = vpack.c.bf16 %v1395, %v1394
        %v1409 = vpack.c.bf16 %v1397, %v1396
        %v1410 = vpack.c.bf16 %v1399, %v1398
        %v1411 = vpack.c.bf16 %v1401, %v1400
        %v1412 = vpack.c.bf16 %v1403, %v1402
        %v1413 = vpack.c.bf16 %v1405, %v1404
        %v1414 = vld [vmem:[%s5] sm:$0xf]
        %v1415 = vld [vmem:[%s5 + $0x4] sm:$0xf]
        %v1416 = vld [vmem:[%s5 + $0x8] sm:$0xf]
        %v1420 = vunpack.c.l.b16 %v1414
        %v1421 = vunpack.c.l.b16 %v1415
        %v1422 = vunpack.c.l.b16 %v1416
        %v1423 = vpack.c.b16 %v1421, %v1420
        %v1424 = vpack.c.b16 %v1422, %v1422
        %vm1426 = vcmask 195584
        %v1428 = vsel %vm1426, %v1406, 0
        %v1431 = vsel %vm1426, %v1407, 0
        %v1434 = vsel %vm1426, %v1408, 0
        %v1437 = vsel %vm1426, %v1409, 0
        %v1440 = vsel %vm1426, %v1410, 0
        %v1443 = vsel %vm1426, %v1411, 0
        %v1446 = vsel %vm1426, %v1412, 0
        %v1449 = vsel %vm1426, %v1413, 0
        %vm1451 = vcmask 1043456
        %v1453 = vsel %vm1451, %v1424, 0
        %1455 = vmatpush.bf16.msra.mxu0 0
        %1456 = vmatpush.bf16.msra.mxu0 0
        %1457 = vmatpush.bf16.msra.mxu0 0
        %1458 = vmatpush.bf16.msra.mxu0 0
        %1459 = vmatpush.bf16.msra.mxu0 0
        %1460 = vmatpush.bf16.msra.mxu0 0
        %1461 = vmatpush.bf16.msra.mxu0 %v1453
        %1462 = vmatpush.bf16.msra.mxu0 %v1423
        %1463 = vmatmul.bf16.gmra.mxu0 %v1428
        %v1464 = vpop.f32.mrf.mxu0
        %v1465 = vadd.f32 0.0, %v1464
        %v1466 = vpop.f32.mrf.mxu0
        %v1467 = vadd.f32 0.0, %v1466
        %1468 = vmatmul.bf16.gmra.mxu0 %v1431
        %v1469 = vpop.f32.mrf.mxu0
        %v1470 = vadd.f32 0.0, %v1469
        %v1471 = vpop.f32.mrf.mxu0
        %v1472 = vadd.f32 0.0, %v1471
        %1473 = vmatmul.bf16.gmra.mxu0 %v1434
        %v1474 = vpop.f32.mrf.mxu0
        %v1475 = vadd.f32 0.0, %v1474
        %v1476 = vpop.f32.mrf.mxu0
        %v1477 = vadd.f32 0.0, %v1476
        %1478 = vmatmul.bf16.gmra.mxu0 %v1437
        %v1479 = vpop.f32.mrf.mxu0
        %v1480 = vadd.f32 0.0, %v1479
        %v1481 = vpop.f32.mrf.mxu0
        %v1482 = vadd.f32 0.0, %v1481
        %1483 = vmatmul.bf16.gmra.mxu0 %v1440
        %v1484 = vpop.f32.mrf.mxu0
        %v1485 = vadd.f32 0.0, %v1484
        %v1486 = vpop.f32.mrf.mxu0
        %v1487 = vadd.f32 0.0, %v1486
        %1488 = vmatmul.bf16.gmra.mxu0 %v1443
        %v1489 = vpop.f32.mrf.mxu0
        %v1490 = vadd.f32 0.0, %v1489
        %v1491 = vpop.f32.mrf.mxu0
        %v1492 = vadd.f32 0.0, %v1491
        %1493 = vmatmul.bf16.gmra.mxu0 %v1446
        %v1494 = vpop.f32.mrf.mxu0
        %v1495 = vadd.f32 0.0, %v1494
        %v1496 = vpop.f32.mrf.mxu0
        %v1497 = vadd.f32 0.0, %v1496
        %1498 = vmatmul.bf16.gmra.mxu0 %v1449
        %v1499 = vpop.f32.mrf.mxu0
        %v1500 = vadd.f32 0.0, %v1499
        %v1501 = vpop.f32.mrf.mxu0
        %v1502 = vadd.f32 0.0, %v1501
        %1503 = vdwg.mxu0
        %v1504 = vld [vmem:[%s6] sm:$0x1]
        %v1506 = vperm.slane %v1504, 0
        %v1508 = vmul.f32 %v1465, %v1506
        %v1509 = vmul.f32 %v1467, %v1506
        %v1510 = vmul.f32 %v1470, %v1506
        %v1511 = vmul.f32 %v1472, %v1506
        %v1512 = vmul.f32 %v1475, %v1506
        %v1513 = vmul.f32 %v1477, %v1506
        %v1514 = vmul.f32 %v1480, %v1506
        %v1515 = vmul.f32 %v1482, %v1506
        %v1516 = vmul.f32 %v1485, %v1506
        %v1517 = vmul.f32 %v1487, %v1506
        %v1518 = vmul.f32 %v1490, %v1506
        %v1519 = vmul.f32 %v1492, %v1506
        %v1520 = vmul.f32 %v1495, %v1506
        %v1521 = vmul.f32 %v1497, %v1506
        %v1522 = vmul.f32 %v1500, %v1506
        %v1523 = vmul.f32 %v1502, %v1506
        %v1524 = vld [vmem:[%s7] sm:$0x1]
        %v1526 = vperm.slane %v1524, 0
        %v1528 = vadd.f32 %v1508, %v1526
        %v1529 = vadd.f32 %v1509, %v1526
        %v1530 = vadd.f32 %v1510, %v1526
        %v1531 = vadd.f32 %v1511, %v1526
        %v1532 = vadd.f32 %v1512, %v1526
        %v1533 = vadd.f32 %v1513, %v1526
        %v1534 = vadd.f32 %v1514, %v1526
        %v1535 = vadd.f32 %v1515, %v1526
        %v1536 = vadd.f32 %v1516, %v1526
        %v1537 = vadd.f32 %v1517, %v1526
        %v1538 = vadd.f32 %v1518, %v1526
        %v1539 = vadd.f32 %v1519, %v1526
        %v1540 = vadd.f32 %v1520, %v1526
        %v1541 = vadd.f32 %v1521, %v1526
        %v1542 = vadd.f32 %v1522, %v1526
        %v1543 = vadd.f32 %v1523, %v1526
        %vm1544 = vcmp.gt.f32.partialorder %v1528, 0.0
        %vm1545 = vcmp.gt.f32.partialorder %v1529, 0.0
        %vm1546 = vcmp.gt.f32.partialorder %v1530, 0.0
        %vm1547 = vcmp.gt.f32.partialorder %v1531, 0.0
        %vm1548 = vcmp.gt.f32.partialorder %v1532, 0.0
        %vm1549 = vcmp.gt.f32.partialorder %v1533, 0.0
        %vm1550 = vcmp.gt.f32.partialorder %v1534, 0.0
        %vm1551 = vcmp.gt.f32.partialorder %v1535, 0.0
        %vm1552 = vcmp.gt.f32.partialorder %v1536, 0.0
        %vm1553 = vcmp.gt.f32.partialorder %v1537, 0.0
        %vm1554 = vcmp.gt.f32.partialorder %v1538, 0.0
        %vm1555 = vcmp.gt.f32.partialorder %v1539, 0.0
        %vm1556 = vcmp.gt.f32.partialorder %v1540, 0.0
        %vm1557 = vcmp.gt.f32.partialorder %v1541, 0.0
        %vm1558 = vcmp.gt.f32.partialorder %v1542, 0.0
        %vm1559 = vcmp.gt.f32.partialorder %v1543, 0.0
        %v1560 = vmul.f32 %v1528, 0.1
        %v1561 = vmul.f32 %v1529, 0.1
        %v1562 = vmul.f32 %v1530, 0.1
        %v1563 = vmul.f32 %v1531, 0.1
        %v1564 = vmul.f32 %v1532, 0.1
        %v1565 = vmul.f32 %v1533, 0.1
        %v1566 = vmul.f32 %v1534, 0.1
        %v1567 = vmul.f32 %v1535, 0.1
        %v1568 = vmul.f32 %v1536, 0.1
        %v1569 = vmul.f32 %v1537, 0.1
        %v1570 = vmul.f32 %v1538, 0.1
        %v1571 = vmul.f32 %v1539, 0.1
        %v1572 = vmul.f32 %v1540, 0.1
        %v1573 = vmul.f32 %v1541, 0.1
        %v1574 = vmul.f32 %v1542, 0.1
        %v1575 = vmul.f32 %v1543, 0.1
        %v1576 = vsel %vm1544, %v1528, %v1560
        %v1577 = vsel %vm1545, %v1529, %v1561
        %v1578 = vsel %vm1546, %v1530, %v1562
        %v1579 = vsel %vm1547, %v1531, %v1563
        %v1580 = vsel %vm1548, %v1532, %v1564
        %v1581 = vsel %vm1549, %v1533, %v1565
        %v1582 = vsel %vm1550, %v1534, %v1566
        %v1583 = vsel %vm1551, %v1535, %v1567
        %v1584 = vsel %vm1552, %v1536, %v1568
        %v1585 = vsel %vm1553, %v1537, %v1569
        %v1586 = vsel %vm1554, %v1538, %v1570
        %v1587 = vsel %vm1555, %v1539, %v1571
        %v1588 = vsel %vm1556, %v1540, %v1572
        %v1589 = vsel %vm1557, %v1541, %v1573
        %v1590 = vsel %vm1558, %v1542, %v1574
        %v1591 = vsel %vm1559, %v1543, %v1575
        %v1592 = vmul.f32 %v1576, %v1055
        %v1593 = vmul.f32 %v1577, %v1060
        %v1594 = vmul.f32 %v1578, %v1065
        %v1595 = vmul.f32 %v1579, %v1070
        %v1596 = vmul.f32 %v1580, %v1075
        %v1597 = vmul.f32 %v1581, %v1080
        %v1598 = vmul.f32 %v1582, %v1085
        %v1599 = vmul.f32 %v1583, %v1090
        %v1600 = vmul.f32 %v1584, %v1095
        %v1601 = vmul.f32 %v1585, %v1100
        %v1602 = vmul.f32 %v1586, %v1105
        %v1603 = vmul.f32 %v1587, %v1110
        %v1604 = vmul.f32 %v1588, %v1115
        %v1605 = vmul.f32 %v1589, %v1120
        %v1606 = vmul.f32 %v1590, %v1125
        %v1607 = vmul.f32 %v1591, %v1130
        %v1608 = vrot.slane %v1592, 7
        %v1609 = vrot.slane %v1593, 7
        %v1610 = vrot.slane %v1594, 7
        %v1611 = vrot.slane %v1595, 7
        %v1612 = vrot.slane %v1596, 7
        %v1613 = vrot.slane %v1597, 7
        %v1614 = vrot.slane %v1598, 7
        %v1615 = vrot.slane %v1599, 7
        %v1616 = vrot.slane %v1600, 7
        %v1617 = vrot.slane %v1601, 7
        %v1618 = vrot.slane %v1602, 7
        %v1619 = vrot.slane %v1603, 7
        %v1620 = vrot.slane %v1604, 7
        %v1621 = vrot.slane %v1605, 7
        %v1622 = vrot.slane %v1606, 7
        %v1623 = vrot.slane %v1607, 7
        %v1624 = vsel %vm614, %v1622, %v1623
        %v1625 = vsel %vm614, %v1621, %v1622
        %v1626 = vsel %vm614, %v1620, %v1621
        %v1627 = vsel %vm614, %v1619, %v1620
        %v1628 = vsel %vm614, %v1618, %v1619
        %v1629 = vsel %vm614, %v1617, %v1618
        %v1630 = vsel %vm614, %v1616, %v1617
        %v1631 = vsel %vm614, %v1615, %v1616
        %v1632 = vsel %vm614, %v1614, %v1615
        %v1633 = vsel %vm614, %v1613, %v1614
        %v1634 = vsel %vm614, %v1612, %v1613
        %v1635 = vsel %vm614, %v1611, %v1612
        %v1636 = vsel %vm614, %v1610, %v1611
        %v1637 = vsel %vm614, %v1609, %v1610
        %v1638 = vsel %vm614, %v1608, %v1609
        %v1639 = vsel %vm614, %v1623, %v1608
        %v1640 = vsel %vm633, %v1639, 0.0
        %v1641 = vsel %vm634, %v1638, 0.0
        %v1642 = vsel %vm633, %v1637, 0.0
        %v1643 = vsel %vm634, %v1636, 0.0
        %v1644 = vsel %vm633, %v1635, 0.0
        %v1645 = vsel %vm634, %v1634, 0.0
        %v1646 = vsel %vm633, %v1633, 0.0
        %v1647 = vsel %vm634, %v1632, 0.0
        %v1648 = vsel %vm633, %v1631, 0.0
        %v1649 = vsel %vm634, %v1630, 0.0
        %v1650 = vsel %vm633, %v1629, 0.0
        %v1651 = vsel %vm634, %v1628, 0.0
        %v1652 = vsel %vm633, %v1627, 0.0
        %v1653 = vsel %vm634, %v1626, 0.0
        %v1654 = vsel %vm633, %v1625, 0.0
        %v1655 = vsel %vm634, %v1624, 0.0
        %v1656 = vrot.slane %v1592, 1
        %v1657 = vrot.slane %v1593, 1
        %v1658 = vrot.slane %v1594, 1
        %v1659 = vrot.slane %v1595, 1
        %v1660 = vrot.slane %v1596, 1
        %v1661 = vrot.slane %v1597, 1
        %v1662 = vrot.slane %v1598, 1
        %v1663 = vrot.slane %v1599, 1
        %v1664 = vrot.slane %v1600, 1
        %v1665 = vrot.slane %v1601, 1
        %v1666 = vrot.slane %v1602, 1
        %v1667 = vrot.slane %v1603, 1
        %v1668 = vrot.slane %v1604, 1
        %v1669 = vrot.slane %v1605, 1
        %v1670 = vrot.slane %v1606, 1
        %v1671 = vrot.slane %v1607, 1
        %v1672 = vsel %vm667, %v1670, %v1671
        %v1673 = vsel %vm667, %v1669, %v1670
        %v1674 = vsel %vm667, %v1668, %v1669
        %v1675 = vsel %vm667, %v1667, %v1668
        %v1676 = vsel %vm667, %v1666, %v1667
        %v1677 = vsel %vm667, %v1665, %v1666
        %v1678 = vsel %vm667, %v1664, %v1665
        %v1679 = vsel %vm667, %v1663, %v1664
        %v1680 = vsel %vm667, %v1662, %v1663
        %v1681 = vsel %vm667, %v1661, %v1662
        %v1682 = vsel %vm667, %v1660, %v1661
        %v1683 = vsel %vm667, %v1659, %v1660
        %v1684 = vsel %vm667, %v1658, %v1659
        %v1685 = vsel %vm667, %v1657, %v1658
        %v1686 = vsel %vm667, %v1656, %v1657
        %v1687 = vsel %vm667, %v1671, %v1656
        %v1688 = vsel %vm686, %v1686, 0.0
        %v1689 = vsel %vm687, %v1685, 0.0
        %v1690 = vsel %vm686, %v1684, 0.0
        %v1691 = vsel %vm687, %v1683, 0.0
        %v1692 = vsel %vm686, %v1682, 0.0
        %v1693 = vsel %vm687, %v1681, 0.0
        %v1694 = vsel %vm686, %v1680, 0.0
        %v1695 = vsel %vm687, %v1679, 0.0
        %v1696 = vsel %vm686, %v1678, 0.0
        %v1697 = vsel %vm687, %v1677, 0.0
        %v1698 = vsel %vm686, %v1676, 0.0
        %v1699 = vsel %vm687, %v1675, 0.0
        %v1700 = vsel %vm686, %v1674, 0.0
        %v1701 = vsel %vm687, %v1673, 0.0
        %v1702 = vsel %vm686, %v1672, 0.0
        %v1703 = vsel %vm687, %v1687, 0.0
        %1720 = vrot.lane.b32.xlu0 %v1592, 16
        %v1721 = vpop.permute.xlu0 %1720
        %1722 = vrot.lane.b32.xlu0 %v1593, 16
        %v1723 = vpop.permute.xlu0 %1722
        %1724 = vrot.lane.b32.xlu0 %v1594, 16
        %v1725 = vpop.permute.xlu0 %1724
        %1726 = vrot.lane.b32.xlu0 %v1595, 16
        %v1727 = vpop.permute.xlu0 %1726
        %1728 = vrot.lane.b32.xlu0 %v1596, 16
        %v1729 = vpop.permute.xlu0 %1728
        %1730 = vrot.lane.b32.xlu0 %v1597, 16
        %v1731 = vpop.permute.xlu0 %1730
        %1732 = vrot.lane.b32.xlu0 %v1598, 16
        %v1733 = vpop.permute.xlu0 %1732
        %1734 = vrot.lane.b32.xlu0 %v1599, 16
        %v1735 = vpop.permute.xlu0 %1734
        %1736 = vrot.lane.b32.xlu0 %v1600, 16
        %v1737 = vpop.permute.xlu0 %1736
        %1738 = vrot.lane.b32.xlu0 %v1601, 16
        %v1739 = vpop.permute.xlu0 %1738
        %1740 = vrot.lane.b32.xlu0 %v1602, 16
        %v1741 = vpop.permute.xlu0 %1740
        %1742 = vrot.lane.b32.xlu0 %v1603, 16
        %v1743 = vpop.permute.xlu0 %1742
        %1744 = vrot.lane.b32.xlu0 %v1604, 16
        %v1745 = vpop.permute.xlu0 %1744
        %1746 = vrot.lane.b32.xlu0 %v1605, 16
        %v1747 = vpop.permute.xlu0 %1746
        %1748 = vrot.lane.b32.xlu0 %v1606, 16
        %v1749 = vpop.permute.xlu0 %1748
        %1750 = vrot.lane.b32.xlu0 %v1607, 16
        %v1751 = vpop.permute.xlu0 %1750
        %1784 = vrot.lane.b32.xlu0 %v1688, 32
        %v1785 = vpop.permute.xlu0 %1784
        %1786 = vrot.lane.b32.xlu0 %v1689, 32
        %v1787 = vpop.permute.xlu0 %1786
        %1788 = vrot.lane.b32.xlu0 %v1690, 32
        %v1789 = vpop.permute.xlu0 %1788
        %1790 = vrot.lane.b32.xlu0 %v1691, 32
        %v1791 = vpop.permute.xlu0 %1790
        %1792 = vrot.lane.b32.xlu0 %v1692, 32
        %v1793 = vpop.permute.xlu0 %1792
        %1794 = vrot.lane.b32.xlu0 %v1693, 32
        %v1795 = vpop.permute.xlu0 %1794
        %1796 = vrot.lane.b32.xlu0 %v1694, 32
        %v1797 = vpop.permute.xlu0 %1796
        %1798 = vrot.lane.b32.xlu0 %v1695, 32
        %v1799 = vpop.permute.xlu0 %1798
        %1800 = vrot.lane.b32.xlu0 %v1696, 32
        %v1801 = vpop.permute.xlu0 %1800
        %1802 = vrot.lane.b32.xlu0 %v1697, 32
        %v1803 = vpop.permute.xlu0 %1802
        %1804 = vrot.lane.b32.xlu0 %v1698, 32
        %v1805 = vpop.permute.xlu0 %1804
        %1806 = vrot.lane.b32.xlu0 %v1699, 32
        %v1807 = vpop.permute.xlu0 %1806
        %1808 = vrot.lane.b32.xlu0 %v1700, 32
        %v1809 = vpop.permute.xlu0 %1808
        %1810 = vrot.lane.b32.xlu0 %v1701, 32
        %v1811 = vpop.permute.xlu0 %1810
        %1812 = vrot.lane.b32.xlu0 %v1702, 32
        %v1813 = vpop.permute.xlu0 %1812
        %1814 = vrot.lane.b32.xlu0 %v1703, 32
        %v1815 = vpop.permute.xlu0 %1814
        %v1832 = vsel %vm1389, %v1640, %v1721
        %v1833 = vsel %vm1389, %v1641, %v1723
        %v1834 = vsel %vm1389, %v1642, %v1725
        %v1835 = vsel %vm1389, %v1643, %v1727
        %v1836 = vsel %vm1389, %v1644, %v1729
        %v1837 = vsel %vm1389, %v1645, %v1731
        %v1838 = vsel %vm1389, %v1646, %v1733
        %v1839 = vsel %vm1389, %v1647, %v1735
        %v1840 = vsel %vm1389, %v1648, %v1737
        %v1841 = vsel %vm1389, %v1649, %v1739
        %v1842 = vsel %vm1389, %v1650, %v1741
        %v1843 = vsel %vm1389, %v1651, %v1743
        %v1844 = vsel %vm1389, %v1652, %v1745
        %v1845 = vsel %vm1389, %v1653, %v1747
        %v1846 = vsel %vm1389, %v1654, %v1749
        %v1847 = vsel %vm1389, %v1655, %v1751
        %vm1848 = vcmask 261120
        %v1849 = vsel %vm1848, %v1832, %v1785
        %v1850 = vsel %vm1848, %v1833, %v1787
        %v1851 = vsel %vm1848, %v1834, %v1789
        %v1852 = vsel %vm1848, %v1835, %v1791
        %v1853 = vsel %vm1848, %v1836, %v1793
        %v1854 = vsel %vm1848, %v1837, %v1795
        %v1855 = vsel %vm1848, %v1838, %v1797
        %v1856 = vsel %vm1848, %v1839, %v1799
        %v1857 = vsel %vm1848, %v1840, %v1801
        %v1858 = vsel %vm1848, %v1841, %v1803
        %v1859 = vsel %vm1848, %v1842, %v1805
        %v1860 = vsel %vm1848, %v1843, %v1807
        %v1861 = vsel %vm1848, %v1844, %v1809
        %v1862 = vsel %vm1848, %v1845, %v1811
        %v1863 = vsel %vm1848, %v1846, %v1813
        %v1864 = vsel %vm1848, %v1847, %v1815
        %v1865 = vpack.c.bf16 %v1850, %v1849
        %v1866 = vpack.c.bf16 %v1852, %v1851
        %v1867 = vpack.c.bf16 %v1854, %v1853
        %v1868 = vpack.c.bf16 %v1856, %v1855
        %v1869 = vpack.c.bf16 %v1858, %v1857
        %v1870 = vpack.c.bf16 %v1860, %v1859
        %v1871 = vpack.c.bf16 %v1862, %v1861
        %v1872 = vpack.c.bf16 %v1864, %v1863
        %v1873 = vld [vmem:[%s8] sm:$0xf]
        %v1874 = vld [vmem:[%s8 + $0x4] sm:$0xf]
        %v1875 = vld [vmem:[%s8 + $0x8] sm:$0xf]
        %v1876 = vld [vmem:[%s8 + $0xc] sm:$0xf]
        %v1877 = vld [vmem:[%s8 + $0x10] sm:$0xf]
        %v1878 = vld [vmem:[%s8 + $0x14] sm:$0xf]
        %v1885 = vunpack.c.l.b16 %v1873
        %v1886 = vunpack.c.l.b16 %v1874
        %v1887 = vunpack.c.l.b16 %v1875
        %v1888 = vunpack.c.l.b16 %v1876
        %v1889 = vunpack.c.l.b16 %v1877
        %v1890 = vunpack.c.l.b16 %v1878
        %v1891 = vpack.c.b16 %v1886, %v1885
        %v1892 = vpack.c.b16 %v1888, %v1887
        %v1893 = vpack.c.b16 %v1890, %v1889
        %vm1897 = vcmask 392192
        %v1899 = vsel %vm1897, %v1865, 0
        %v1902 = vsel %vm1897, %v1866, 0
        %v1905 = vsel %vm1897, %v1867, 0
        %v1908 = vsel %vm1897, %v1868, 0
        %v1911 = vsel %vm1897, %v1869, 0
        %v1914 = vsel %vm1897, %v1870, 0
        %v1917 = vsel %vm1897, %v1871, 0
        %v1920 = vsel %vm1897, %v1872, 0
        %1922 = vmatpush.bf16.msra.mxu0 0
        %1923 = vmatpush.bf16.msra.mxu0 0
        %1924 = vmatpush.bf16.msra.mxu0 0
        %1925 = vmatpush.bf16.msra.mxu0 0
        %1926 = vmatpush.bf16.msra.mxu0 0
        %1927 = vmatpush.bf16.msra.mxu0 %v1893
        %1928 = vmatpush.bf16.msra.mxu0 %v1892
        %1929 = vmatpush.bf16.msra.mxu0 %v1891
        %1930 = vmatmul.bf16.gmra.mxu0 %v1899
        %v1931 = vpop.f32.mrf.mxu0
        %v1932 = vadd.f32 0.0, %v1931
        %v1933 = vpop.f32.mrf.mxu0
        %v1934 = vadd.f32 0.0, %v1933
        %1935 = vmatmul.bf16.gmra.mxu0 %v1902
        %v1936 = vpop.f32.mrf.mxu0
        %v1937 = vadd.f32 0.0, %v1936
        %v1938 = vpop.f32.mrf.mxu0
        %v1939 = vadd.f32 0.0, %v1938
        %1940 = vmatmul.bf16.gmra.mxu0 %v1905
        %v1941 = vpop.f32.mrf.mxu0
        %v1942 = vadd.f32 0.0, %v1941
        %v1943 = vpop.f32.mrf.mxu0
        %v1944 = vadd.f32 0.0, %v1943
        %1945 = vmatmul.bf16.gmra.mxu0 %v1908
        %v1946 = vpop.f32.mrf.mxu0
        %v1947 = vadd.f32 0.0, %v1946
        %v1948 = vpop.f32.mrf.mxu0
        %v1949 = vadd.f32 0.0, %v1948
        %1950 = vmatmul.bf16.gmra.mxu0 %v1911
        %v1951 = vpop.f32.mrf.mxu0
        %v1952 = vadd.f32 0.0, %v1951
        %v1953 = vpop.f32.mrf.mxu0
        %v1954 = vadd.f32 0.0, %v1953
        %1955 = vmatmul.bf16.gmra.mxu0 %v1914
        %v1956 = vpop.f32.mrf.mxu0
        %v1957 = vadd.f32 0.0, %v1956
        %v1958 = vpop.f32.mrf.mxu0
        %v1959 = vadd.f32 0.0, %v1958
        %1960 = vmatmul.bf16.gmra.mxu0 %v1917
        %v1961 = vpop.f32.mrf.mxu0
        %v1962 = vadd.f32 0.0, %v1961
        %v1963 = vpop.f32.mrf.mxu0
        %v1964 = vadd.f32 0.0, %v1963
        %1965 = vmatmul.bf16.gmra.mxu0 %v1920
        %v1966 = vpop.f32.mrf.mxu0
        %v1967 = vadd.f32 0.0, %v1966
        %v1968 = vpop.f32.mrf.mxu0
        %v1969 = vadd.f32 0.0, %v1968
        %1970 = vdwg.mxu0
        %v1971 = vld [vmem:[%s9] sm:$0x1]
        %v1973 = vperm.slane %v1971, 0
        %v1975 = vmul.f32 %v1932, %v1973
        %v1976 = vmul.f32 %v1934, %v1973
        %v1977 = vmul.f32 %v1937, %v1973
        %v1978 = vmul.f32 %v1939, %v1973
        %v1979 = vmul.f32 %v1942, %v1973
        %v1980 = vmul.f32 %v1944, %v1973
        %v1981 = vmul.f32 %v1947, %v1973
        %v1982 = vmul.f32 %v1949, %v1973
        %v1983 = vmul.f32 %v1952, %v1973
        %v1984 = vmul.f32 %v1954, %v1973
        %v1985 = vmul.f32 %v1957, %v1973
        %v1986 = vmul.f32 %v1959, %v1973
        %v1987 = vmul.f32 %v1962, %v1973
        %v1988 = vmul.f32 %v1964, %v1973
        %v1989 = vmul.f32 %v1967, %v1973
        %v1990 = vmul.f32 %v1969, %v1973
        %v1991 = vld [vmem:[%s10] sm:$0x1]
        %v1993 = vperm.slane %v1991, 0
        %v1995 = vadd.f32 %v1975, %v1993
        %v1996 = vadd.f32 %v1976, %v1993
        %v1997 = vadd.f32 %v1977, %v1993
        %v1998 = vadd.f32 %v1978, %v1993
        %v1999 = vadd.f32 %v1979, %v1993
        %v2000 = vadd.f32 %v1980, %v1993
        %v2001 = vadd.f32 %v1981, %v1993
        %v2002 = vadd.f32 %v1982, %v1993
        %v2003 = vadd.f32 %v1983, %v1993
        %v2004 = vadd.f32 %v1984, %v1993
        %v2005 = vadd.f32 %v1985, %v1993
        %v2006 = vadd.f32 %v1986, %v1993
        %v2007 = vadd.f32 %v1987, %v1993
        %v2008 = vadd.f32 %v1988, %v1993
        %v2009 = vadd.f32 %v1989, %v1993
        %v2010 = vadd.f32 %v1990, %v1993
        %vm2011 = vcmp.gt.f32.partialorder %v1995, 0.0
        %vm2012 = vcmp.gt.f32.partialorder %v1996, 0.0
        %vm2013 = vcmp.gt.f32.partialorder %v1997, 0.0
        %vm2014 = vcmp.gt.f32.partialorder %v1998, 0.0
        %vm2015 = vcmp.gt.f32.partialorder %v1999, 0.0
        %vm2016 = vcmp.gt.f32.partialorder %v2000, 0.0
        %vm2017 = vcmp.gt.f32.partialorder %v2001, 0.0
        %vm2018 = vcmp.gt.f32.partialorder %v2002, 0.0
        %vm2019 = vcmp.gt.f32.partialorder %v2003, 0.0
        %vm2020 = vcmp.gt.f32.partialorder %v2004, 0.0
        %vm2021 = vcmp.gt.f32.partialorder %v2005, 0.0
        %vm2022 = vcmp.gt.f32.partialorder %v2006, 0.0
        %vm2023 = vcmp.gt.f32.partialorder %v2007, 0.0
        %vm2024 = vcmp.gt.f32.partialorder %v2008, 0.0
        %vm2025 = vcmp.gt.f32.partialorder %v2009, 0.0
        %vm2026 = vcmp.gt.f32.partialorder %v2010, 0.0
        %v2027 = vmul.f32 %v1995, 0.1
        %v2028 = vmul.f32 %v1996, 0.1
        %v2029 = vmul.f32 %v1997, 0.1
        %v2030 = vmul.f32 %v1998, 0.1
        %v2031 = vmul.f32 %v1999, 0.1
        %v2032 = vmul.f32 %v2000, 0.1
        %v2033 = vmul.f32 %v2001, 0.1
        %v2034 = vmul.f32 %v2002, 0.1
        %v2035 = vmul.f32 %v2003, 0.1
        %v2036 = vmul.f32 %v2004, 0.1
        %v2037 = vmul.f32 %v2005, 0.1
        %v2038 = vmul.f32 %v2006, 0.1
        %v2039 = vmul.f32 %v2007, 0.1
        %v2040 = vmul.f32 %v2008, 0.1
        %v2041 = vmul.f32 %v2009, 0.1
        %v2042 = vmul.f32 %v2010, 0.1
        %v2043 = vsel %vm2011, %v1995, %v2027
        %v2044 = vsel %vm2012, %v1996, %v2028
        %v2045 = vsel %vm2013, %v1997, %v2029
        %v2046 = vsel %vm2014, %v1998, %v2030
        %v2047 = vsel %vm2015, %v1999, %v2031
        %v2048 = vsel %vm2016, %v2000, %v2032
        %v2049 = vsel %vm2017, %v2001, %v2033
        %v2050 = vsel %vm2018, %v2002, %v2034
        %v2051 = vsel %vm2019, %v2003, %v2035
        %v2052 = vsel %vm2020, %v2004, %v2036
        %v2053 = vsel %vm2021, %v2005, %v2037
        %v2054 = vsel %vm2022, %v2006, %v2038
        %v2055 = vsel %vm2023, %v2007, %v2039
        %v2056 = vsel %vm2024, %v2008, %v2040
        %v2057 = vsel %vm2025, %v2009, %v2041
        %v2058 = vsel %vm2026, %v2010, %v2042
        %v2059 = vmul.f32 %v2043, %v1055
        %v2060 = vmul.f32 %v2044, %v1060
        %v2061 = vmul.f32 %v2045, %v1065
        %v2062 = vmul.f32 %v2046, %v1070
        %v2063 = vmul.f32 %v2047, %v1075
        %v2064 = vmul.f32 %v2048, %v1080
        %v2065 = vmul.f32 %v2049, %v1085
        %v2066 = vmul.f32 %v2050, %v1090
        %v2067 = vmul.f32 %v2051, %v1095
        %v2068 = vmul.f32 %v2052, %v1100
        %v2069 = vmul.f32 %v2053, %v1105
        %v2070 = vmul.f32 %v2054, %v1110
        %v2071 = vmul.f32 %v2055, %v1115
        %v2072 = vmul.f32 %v2056, %v1120
        %v2073 = vmul.f32 %v2057, %v1125
        %v2074 = vmul.f32 %v2058, %v1130
        %v2075 = vsel %vm1848, %v2059, 0.0
        %v2076 = vsel %vm1848, %v2060, 0.0
        %v2077 = vadd.f32 %v2075, %v2076
        %v2078 = vrot.slane %v2077, 4
        %v2079 = vadd.f32 %v2077, %v2078
        %v2080 = vrot.slane %v2079, 2
        %v2081 = vadd.f32 %v2079, %v2080
        %v2082 = vrot.slane %v2081, 1
        %v2083 = vadd.f32 %v2081, %v2082
        %v2084 = vsel %vm1848, %v2061, 0.0
        %v2085 = vsel %vm1848, %v2062, 0.0
        %v2086 = vadd.f32 %v2084, %v2085
        %v2087 = vrot.slane %v2086, 4
        %v2088 = vadd.f32 %v2086, %v2087
        %v2089 = vrot.slane %v2088, 2
        %v2090 = vadd.f32 %v2088, %v2089
        %v2091 = vrot.slane %v2090, 1
        %v2092 = vadd.f32 %v2090, %v2091
        %v2093 = vsel %vm1848, %v2063, 0.0
        %v2094 = vsel %vm1848, %v2064, 0.0
        %v2095 = vadd.f32 %v2093, %v2094
        %v2096 = vrot.slane %v2095, 4
        %v2097 = vadd.f32 %v2095, %v2096
        %v2098 = vrot.slane %v2097, 2
        %v2099 = vadd.f32 %v2097, %v2098
        %v2100 = vrot.slane %v2099, 1
        %v2101 = vadd.f32 %v2099, %v2100
        %v2102 = vsel %vm1848, %v2065, 0.0
        %v2103 = vsel %vm1848, %v2066, 0.0
        %v2104 = vadd.f32 %v2102, %v2103
        %v2105 = vrot.slane %v2104, 4
        %v2106 = vadd.f32 %v2104, %v2105
        %v2107 = vrot.slane %v2106, 2
        %v2108 = vadd.f32 %v2106, %v2107
        %v2109 = vrot.slane %v2108, 1
        %v2110 = vadd.f32 %v2108, %v2109
        %v2111 = vsel %vm1848, %v2067, 0.0
        %v2112 = vsel %vm1848, %v2068, 0.0
        %v2113 = vadd.f32 %v2111, %v2112
        %v2114 = vrot.slane %v2113, 4
        %v2115 = vadd.f32 %v2113, %v2114
        %v2116 = vrot.slane %v2115, 2
        %v2117 = vadd.f32 %v2115, %v2116
        %v2118 = vrot.slane %v2117, 1
        %v2119 = vadd.f32 %v2117, %v2118
        %v2120 = vsel %vm1848, %v2069, 0.0
        %v2121 = vsel %vm1848, %v2070, 0.0
        %v2122 = vadd.f32 %v2120, %v2121
        %v2123 = vrot.slane %v2122, 4
        %v2124 = vadd.f32 %v2122, %v2123
        %v2125 = vrot.slane %v2124, 2
        %v2126 = vadd.f32 %v2124, %v2125
        %v2127 = vrot.slane %v2126, 1
        %v2128 = vadd.f32 %v2126, %v2127
        %v2129 = vsel %vm1848, %v2071, 0.0
        %v2130 = vsel %vm1848, %v2072, 0.0
        %v2131 = vadd.f32 %v2129, %v2130
        %v2132 = vrot.slane %v2131, 4
        %v2133 = vadd.f32 %v2131, %v2132
        %v2134 = vrot.slane %v2133, 2
        %v2135 = vadd.f32 %v2133, %v2134
        %v2136 = vrot.slane %v2135, 1
        %v2137 = vadd.f32 %v2135, %v2136
        %v2138 = vsel %vm1848, %v2073, 0.0
        %v2139 = vsel %vm1848, %v2074, 0.0
        %v2140 = vadd.f32 %v2138, %v2139
        %v2141 = vrot.slane %v2140, 4
        %v2142 = vadd.f32 %v2140, %v2141
        %v2143 = vrot.slane %v2142, 2
        %v2144 = vadd.f32 %v2142, %v2143
        %v2145 = vrot.slane %v2144, 1
        %v2146 = vadd.f32 %v2144, %v2145
        %v2147 = vmax.f32 %v495, 1.0
        %v2148 = vmax.f32 %v504, 1.0
        %v2149 = vmax.f32 %v513, 1.0
        %v2150 = vmax.f32 %v522, 1.0
        %v2151 = vmax.f32 %v531, 1.0
        %v2152 = vmax.f32 %v540, 1.0
        %v2153 = vmax.f32 %v549, 1.0
        %v2154 = vmax.f32 %v558, 1.0
        %v2155 = vrcp.pop %v2147
        %v2156 = vmul.f32 %v2147, %v2155
        %v2157 = vsub.f32 1.0, %v2156
        %v2158 = vmul.f32 %v2155, %v2157
        %v2159 = vadd.f32 %v2155, %v2158
        %vm2160 = vweird.f32 %v2147
        %vm2161 = vweird.f32 %v2155
        %vm2162 = vmor %vm2160, %vm2161
        %v2163 = vsel %vm2162, %v2155, %v2159
        %v2164 = vand.u32 2147483647, %v2147
        %vm2165 = vcmp.eq.f32.partialorder %v2164, 8.507059e+37
        %v2166 = vand.u32 %v2147, 2147483648
        %v2167 = vor.u32 1.1754944e-38, %v2166
        %v2168 = vsel %vm2165, %v2167, %v2163
        %v2169 = vmul.f32 1.0, %v2168
        %v2170 = vrcp.pop %v2148
        %v2171 = vmul.f32 %v2148, %v2170
        %v2172 = vsub.f32 1.0, %v2171
        %v2173 = vmul.f32 %v2170, %v2172
        %v2174 = vadd.f32 %v2170, %v2173
        %vm2175 = vweird.f32 %v2148
        %vm2176 = vweird.f32 %v2170
        %vm2177 = vmor %vm2175, %vm2176
        %v2178 = vsel %vm2177, %v2170, %v2174
        %v2179 = vand.u32 2147483647, %v2148
        %vm2180 = vcmp.eq.f32.partialorder %v2179, 8.507059e+37
        %v2181 = vand.u32 %v2148, 2147483648
        %v2182 = vor.u32 1.1754944e-38, %v2181
        %v2183 = vsel %vm2180, %v2182, %v2178
        %v2184 = vmul.f32 1.0, %v2183
        %v2185 = vrcp.pop %v2149
        %v2186 = vmul.f32 %v2149, %v2185
        %v2187 = vsub.f32 1.0, %v2186
        %v2188 = vmul.f32 %v2185, %v2187
        %v2189 = vadd.f32 %v2185, %v2188
        %vm2190 = vweird.f32 %v2149
        %vm2191 = vweird.f32 %v2185
        %vm2192 = vmor %vm2190, %vm2191
        %v2193 = vsel %vm2192, %v2185, %v2189
        %v2194 = vand.u32 2147483647, %v2149
        %vm2195 = vcmp.eq.f32.partialorder %v2194, 8.507059e+37
        %v2196 = vand.u32 %v2149, 2147483648
        %v2197 = vor.u32 1.1754944e-38, %v2196
        %v2198 = vsel %vm2195, %v2197, %v2193
        %v2199 = vmul.f32 1.0, %v2198
        %v2200 = vrcp.pop %v2150
        %v2201 = vmul.f32 %v2150, %v2200
        %v2202 = vsub.f32 1.0, %v2201
        %v2203 = vmul.f32 %v2200, %v2202
        %v2204 = vadd.f32 %v2200, %v2203
        %vm2205 = vweird.f32 %v2150
        %vm2206 = vweird.f32 %v2200
        %vm2207 = vmor %vm2205, %vm2206
        %v2208 = vsel %vm2207, %v2200, %v2204
        %v2209 = vand.u32 2147483647, %v2150
        %vm2210 = vcmp.eq.f32.partialorder %v2209, 8.507059e+37
        %v2211 = vand.u32 %v2150, 2147483648
        %v2212 = vor.u32 1.1754944e-38, %v2211
        %v2213 = vsel %vm2210, %v2212, %v2208
        %v2214 = vmul.f32 1.0, %v2213
        %v2215 = vrcp.pop %v2151
        %v2216 = vmul.f32 %v2151, %v2215
        %v2217 = vsub.f32 1.0, %v2216
        %v2218 = vmul.f32 %v2215, %v2217
        %v2219 = vadd.f32 %v2215, %v2218
        %vm2220 = vweird.f32 %v2151
        %vm2221 = vweird.f32 %v2215
        %vm2222 = vmor %vm2220, %vm2221
        %v2223 = vsel %vm2222, %v2215, %v2219
        %v2224 = vand.u32 2147483647, %v2151
        %vm2225 = vcmp.eq.f32.partialorder %v2224, 8.507059e+37
        %v2226 = vand.u32 %v2151, 2147483648
        %v2227 = vor.u32 1.1754944e-38, %v2226
        %v2228 = vsel %vm2225, %v2227, %v2223
        %v2229 = vmul.f32 1.0, %v2228
        %v2230 = vrcp.pop %v2152
        %v2231 = vmul.f32 %v2152, %v2230
        %v2232 = vsub.f32 1.0, %v2231
        %v2233 = vmul.f32 %v2230, %v2232
        %v2234 = vadd.f32 %v2230, %v2233
        %vm2235 = vweird.f32 %v2152
        %vm2236 = vweird.f32 %v2230
        %vm2237 = vmor %vm2235, %vm2236
        %v2238 = vsel %vm2237, %v2230, %v2234
        %v2239 = vand.u32 2147483647, %v2152
        %vm2240 = vcmp.eq.f32.partialorder %v2239, 8.507059e+37
        %v2241 = vand.u32 %v2152, 2147483648
        %v2242 = vor.u32 1.1754944e-38, %v2241
        %v2243 = vsel %vm2240, %v2242, %v2238
        %v2244 = vmul.f32 1.0, %v2243
        %v2245 = vrcp.pop %v2153
        %v2246 = vmul.f32 %v2153, %v2245
        %v2247 = vsub.f32 1.0, %v2246
        %v2248 = vmul.f32 %v2245, %v2247
        %v2249 = vadd.f32 %v2245, %v2248
        %vm2250 = vweird.f32 %v2153
        %vm2251 = vweird.f32 %v2245
        %vm2252 = vmor %vm2250, %vm2251
        %v2253 = vsel %vm2252, %v2245, %v2249
        %v2254 = vand.u32 2147483647, %v2153
        %vm2255 = vcmp.eq.f32.partialorder %v2254, 8.507059e+37
        %v2256 = vand.u32 %v2153, 2147483648
        %v2257 = vor.u32 1.1754944e-38, %v2256
        %v2258 = vsel %vm2255, %v2257, %v2253
        %v2259 = vmul.f32 1.0, %v2258
        %v2260 = vrcp.pop %v2154
        %v2261 = vmul.f32 %v2154, %v2260
        %v2262 = vsub.f32 1.0, %v2261
        %v2263 = vmul.f32 %v2260, %v2262
        %v2264 = vadd.f32 %v2260, %v2263
        %vm2265 = vweird.f32 %v2154
        %vm2266 = vweird.f32 %v2260
        %vm2267 = vmor %vm2265, %vm2266
        %v2268 = vsel %vm2267, %v2260, %v2264
        %v2269 = vand.u32 2147483647, %v2154
        %vm2270 = vcmp.eq.f32.partialorder %v2269, 8.507059e+37
        %v2271 = vand.u32 %v2154, 2147483648
        %v2272 = vor.u32 1.1754944e-38, %v2271
        %v2273 = vsel %vm2270, %v2272, %v2268
        %v2274 = vmul.f32 1.0, %v2273
        %2276 = vset.pattern.permute.xlu0 0
        %2277 = vperm.xlu0 %2276, %v2169
        %v2278 = vpop.permute.xlu0 %2277
        %2281 = vset.pattern.permute.xlu0 0
        %2282 = vperm.xlu0 %2281, %v2184
        %v2283 = vpop.permute.xlu0 %2282
        %2286 = vset.pattern.permute.xlu0 0
        %2287 = vperm.xlu0 %2286, %v2199
        %v2288 = vpop.permute.xlu0 %2287
        %2291 = vset.pattern.permute.xlu0 0
        %2292 = vperm.xlu0 %2291, %v2214
        %v2293 = vpop.permute.xlu0 %2292
        %2296 = vset.pattern.permute.xlu0 0
        %2297 = vperm.xlu0 %2296, %v2229
        %v2298 = vpop.permute.xlu0 %2297
        %2301 = vset.pattern.permute.xlu0 0
        %2302 = vperm.xlu0 %2301, %v2244
        %v2303 = vpop.permute.xlu0 %2302
        %2306 = vset.pattern.permute.xlu0 0
        %2307 = vperm.xlu0 %2306, %v2259
        %v2308 = vpop.permute.xlu0 %2307
        %2311 = vset.pattern.permute.xlu0 0
        %2312 = vperm.xlu0 %2311, %v2274
        %v2313 = vpop.permute.xlu0 %2312
        %v2315 = vmul.f32 %v2083, %v2278
        %v2316 = vmul.f32 %v2092, %v2283
        %v2317 = vmul.f32 %v2101, %v2288
        %v2318 = vmul.f32 %v2110, %v2293
        %v2319 = vmul.f32 %v2119, %v2298
        %v2320 = vmul.f32 %v2128, %v2303
        %v2321 = vmul.f32 %v2137, %v2308
        %v2322 = vmul.f32 %v2146, %v2313
        %v2323 = vld [vmem:[%s11] sm:$0xff]
        %v2324 = vld [vmem:[%s11 + $0x8] sm:$0xff]
        %v2325 = vld [vmem:[%s11 + $0x10] sm:$0xff]
        %v2326 = vld [vmem:[%s11 + $0x18] sm:$0xff]
        %v2327 = vld [vmem:[%s12] sm:$0x1]
        %v2329 = vperm.slane %v2327, 0
        %vm2339 = vcmask 1041409
        %v2340 = vsel %vm2339, %v2316, %v2315
        %vm2341 = vcmask 1042434
        %v2342 = vsel %vm2341, %v2317, %v2340
        %vm2343 = vcmask 1043459
        %v2344 = vsel %vm2343, %v2318, %v2342
        %vm2345 = vcmask 1044484
        %v2346 = vsel %vm2345, %v2319, %v2344
        %vm2347 = vcmask 1045509
        %v2348 = vsel %vm2347, %v2320, %v2346
        %vm2349 = vcmask 1046534
        %v2350 = vsel %vm2349, %v2321, %v2348
        %vm2351 = vcmask 1047559
        %v2352 = vsel %vm2351, %v2322, %v2350
        %v2353 = vsel %vm1848, %v2352, 0
        %2355 = vmatpush.msra.mxu0 0.0
        %2356 = vmatpush.msra.mxu0 0.0
        %2357 = vmatpush.msra.mxu0 0.0
        %2358 = vmatpush.msra.mxu0 0.0
        %2359 = vmatpush.msra.mxu0 0.0
        %2360 = vmatpush.msra.mxu0 0.0
        %2361 = vmatpush.msra.mxu0 0.0
        %2362 = vmatpush.msra.mxu0 0.0
        %2363 = vmatpush.msra.mxu0 0.0
        %2364 = vmatpush.msra.mxu0 0.0
        %2365 = vmatpush.msra.mxu0 0.0
        %2366 = vmatpush.msra.mxu0 0.0
        %2367 = vmatpush.msra.mxu0 %v2326
        %2368 = vmatpush.msra.mxu0 %v2325
        %2369 = vmatpush.msra.mxu0 %v2324
        %2370 = vmatpush.msra.mxu0 %v2323
        %2371 = vmatmul.f32.gmra.mxu0 %v2353
        %v2372 = vpop.f32.mrf.mxu0
        %v2373 = vadd.f32 %v2329, %v2372
        %2374 = vdwg.mxu0
        %vm2375 = vcmp.gt.f32.partialorder %v495, 0.5
        %vm2376 = vcmp.gt.f32.partialorder %v504, 0.5
        %vm2377 = vcmp.gt.f32.partialorder %v513, 0.5
        %vm2378 = vcmp.gt.f32.partialorder %v522, 0.5
        %vm2379 = vcmp.gt.f32.partialorder %v531, 0.5
        %vm2380 = vcmp.gt.f32.partialorder %v540, 0.5
        %vm2381 = vcmp.gt.f32.partialorder %v549, 0.5
        %vm2382 = vcmp.gt.f32.partialorder %v558, 0.5
        %v2383 = vsel %vm2375, 1, 0
        %v2384 = vsel %vm2376, 1, 0
        %v2385 = vsel %vm2377, 1, 0
        %v2386 = vsel %vm2378, 1, 0
        %v2387 = vsel %vm2379, 1, 0
        %v2388 = vsel %vm2380, 1, 0
        %v2389 = vsel %vm2381, 1, 0
        %v2390 = vsel %vm2382, 1, 0
        %2391 = vset.pattern.permute.xlu0 0
        %2392 = vperm.xlu0 %2391, %v2383
        %v2393 = vpop.permute.xlu0 %2392
        %2394 = vset.pattern.permute.xlu0 0
        %2395 = vperm.xlu0 %2394, %v2384
        %v2396 = vpop.permute.xlu0 %2395
        %2397 = vset.pattern.permute.xlu0 0
        %2398 = vperm.xlu0 %2397, %v2385
        %v2399 = vpop.permute.xlu0 %2398
        %2400 = vset.pattern.permute.xlu0 0
        %2401 = vperm.xlu0 %2400, %v2386
        %v2402 = vpop.permute.xlu0 %2401
        %2403 = vset.pattern.permute.xlu0 0
        %2404 = vperm.xlu0 %2403, %v2387
        %v2405 = vpop.permute.xlu0 %2404
        %2406 = vset.pattern.permute.xlu0 0
        %2407 = vperm.xlu0 %2406, %v2388
        %v2408 = vpop.permute.xlu0 %2407
        %2409 = vset.pattern.permute.xlu0 0
        %2410 = vperm.xlu0 %2409, %v2389
        %v2411 = vpop.permute.xlu0 %2410
        %2412 = vset.pattern.permute.xlu0 0
        %2413 = vperm.xlu0 %2412, %v2390
        %v2414 = vpop.permute.xlu0 %2413
        %vm2415 = vcmp.eq.s32.totalorder %v2393, 1
        %vm2416 = vcmp.eq.s32.totalorder %v2396, 1
        %vm2417 = vcmp.eq.s32.totalorder %v2399, 1
        %vm2418 = vcmp.eq.s32.totalorder %v2402, 1
        %vm2419 = vcmp.eq.s32.totalorder %v2405, 1
        %vm2420 = vcmp.eq.s32.totalorder %v2408, 1
        %vm2421 = vcmp.eq.s32.totalorder %v2411, 1
        %vm2422 = vcmp.eq.s32.totalorder %v2414, 1
        %v2424 = vrot.slane %v2373, 1
        %v2425 = vrot.slane %v2373, 2
        %v2426 = vrot.slane %v2373, 3
        %v2427 = vrot.slane %v2373, 4
        %v2428 = vrot.slane %v2373, 5
        %v2429 = vrot.slane %v2373, 6
        %v2430 = vrot.slane %v2373, 7
        %v2439 = vsel %vm2415, %v2373, 0.0
        %v2440 = vsel %vm2416, %v2424, 0.0
        %v2441 = vsel %vm2417, %v2425, 0.0
        %v2442 = vsel %vm2418, %v2426, 0.0
        %v2443 = vsel %vm2419, %v2427, 0.0
        %v2444 = vsel %vm2420, %v2428, 0.0
        %v2445 = vsel %vm2421, %v2429, 0.0
        %v2446 = vsel %vm2422, %v2430, 0.0
        %v2455 = vrot.slane %v2440, 7
        %v2456 = vsel %vm2339, %v2455, %v2439
        %v2457 = vrot.slane %v2441, 6
        %v2458 = vsel %vm2341, %v2457, %v2456
        %v2459 = vrot.slane %v2442, 5
        %v2460 = vsel %vm2343, %v2459, %v2458
        %v2461 = vrot.slane %v2443, 4
        %v2462 = vsel %vm2345, %v2461, %v2460
        %v2463 = vrot.slane %v2444, 3
        %v2464 = vsel %vm2347, %v2463, %v2462
        %v2465 = vrot.slane %v2445, 2
        %v2466 = vsel %vm2349, %v2465, %v2464
        %v2467 = vrot.slane %v2446, 1
        %v2468 = vsel %vm2351, %v2467, %v2466
        %2470 = vst [vmem:[%s454] sm:$0xff] %v2468
        %s2471 = sand.u32 %s318, 1
        %s2472 = scalar_lea.sflag [#allocation3], %s2471
        %s2473 = sand.u32 %s318, 1
        %s2474 = smul.addr %s2473, 8
        %s2475 = scalar_lea.vmem [#allocation2], %s2474
        // Predicated region
        $region73: #{tpu_custom_call.1} parent=71 // pred_check
          %p2476 = pneg %p328
        $region74: #{tpu_custom_call.1} parent=71 // pred_check_branch
          %2478 = sbr.rel (%p2476) target = $region76
        $region75: #{tpu_custom_call.1} parent=71 // pred_region
          %2480 = vsyncadd %s2472, 0
          %s2481 = smul.addr %s27, 8
          %s2482 = scalar_lea.hbm %s13, %s2481
          %s2484 = sshll.u32 %s2475, 4
          %s2485 = int_to_ptr.vmem [resolvable:$true] %s2484
          %s2486 = sshll.u32 %s2482, 4
          %s2487 = int_to_ptr.hbm [resolvable:$true] %s2486
          %2489 = dma.vmem_to_hbm [thread:$0]  %s2485, 128, %s2487, %s2472
        $region76: #{tpu_custom_call.1} parent=71 // pred_fallthru
          _
      $region72: #{tpu_custom_call.1} parent=5 // pred_fallthru
        _
      %p2490 = scmp.le.s32.totalorder 2, %s22
      // Predicated region
      $region77: #{tpu_custom_call.1} parent=5 // pred_check
        %p2491 = pneg %p2490
      $region78: #{tpu_custom_call.1} parent=5 // pred_check_branch
        %2493 = sbr.rel (%p2491) target = $region80
      $region79: #{tpu_custom_call.1} parent=5 // pred_region
        %s2494 = ssub.s32 %s22, 2
        // Predicated region
        $region81: #{tpu_custom_call.1} parent=79 // pred_check
          %p2495 = pneg %p334
        $region82: #{tpu_custom_call.1} parent=79 // pred_check_branch
          %2497 = sbr.rel (%p2495) target = $region84
        $region83: #{tpu_custom_call.1} parent=79 // pred_region
          %s2498 = sand.u32 %s319, 1
          %s2499 = scalar_lea.sflag [#allocation3], %s2498
          %s2500 = sand.u32 %s319, 1
          %s2501 = smul.addr %s2500, 8
          %s2502 = scalar_lea.vmem [#allocation2], %s2501
          %2504 = dma.done %s2499, 128
        $region84: #{tpu_custom_call.1} parent=79 // pred_fallthru
          _
      $region80: #{tpu_custom_call.1} parent=5 // pred_fallthru
        _
    $region6: #{tpu_custom_call.1} parent=1 // loop_footer
      %s26 = sadd.s32 1, %s22
    $region7: #{tpu_custom_call.1} parent=1 // loop_footer_branch
      %21 = sbr.rel target = $region3
    $region8: #{tpu_custom_call.1} parent=1 // loop_exit
      _
    %2505 = vsyncpa [#allocation3], 1
    %s2506 = scalar_lea.sflag [#allocation3], 1
    %2507 = vsyncpa %s2506, 1

</llo_original>
